<compile_context>
chip_gen: v7x
topology: tpu7x:2x2x1
jax: 0.10.0
libtpu: 0.0.40
codegen_flags: <defaults>
</compile_context>

<pallas_src>
import functools

import jax
import jax.numpy as jnp
from jax import lax
from jax.experimental import pallas as pl
from jax.experimental.pallas import tpu as pltpu


# ---------------------------------------------------------------------------
# Fused single-block kernel (small bags): x, E, V1, A, M all resident in VMEM.
# ---------------------------------------------------------------------------
def _fused_kernel(x_ref, w_emb_ref, b_emb_ref, w_trans_ref, w_deep_ref,
                  m_ref, a_ref, e_ref):
    x = x_ref[...]                                            # (N, L) f32
    # Embedding: bf16 x bf16 -> f32 on the MXU, tanh on the EUP.
    e = jnp.tanh(jnp.dot(x.astype(jnp.bfloat16), w_emb_ref[...],
                         preferred_element_type=jnp.float32)
                 + b_emb_ref[...])                            # (N, D) f32
    e_ref[...] = e

    # V1 = E @ W_trans.T   (contract the D axis of both operands).
    v1 = lax.dot_general(e, w_trans_ref[...],
                         dimension_numbers=(((1,), (1,)), ((), ())),
                         preferred_element_type=jnp.float32)  # (N, K)
    # First column softmax (over instances, axis 0).  Exact divide (one-off).
    a1 = jnp.exp(v1 - jnp.max(v1, axis=0, keepdims=True))
    a1 = a1 / jnp.sum(a1, axis=0, keepdims=True)
    # V2 = A1 @ W_deep.T  (K is tiny: broadcast-multiply + lane reduce).
    v2 = jnp.sum(a1 * w_deep_ref[...], axis=1, keepdims=True)  # (N, 1)
    # Second column softmax.
    a2 = jnp.exp(v2 - jnp.max(v2, axis=0, keepdims=True))
    a2 = a2 / jnp.sum(a2, axis=0, keepdims=True)               # (N, 1)
    a_ref[...] = a2

    # M = A @ x as a broadcast-multiply + sublane reduction (f32, no MXU /
    # transpose needed for the tiny 1xL result).
    m_ref[...] = jnp.sum(a2 * x, axis=0, keepdims=True)        # (1, L)


# ---------------------------------------------------------------------------
# Tiled path, kernel 1: per row tile, E = tanh(x @ W_emb + b) and lane-dense
# attention logits V1_row = W_trans @ E^T  ((K, TN)).
# ---------------------------------------------------------------------------
def _embed_kernel(x_ref, w_emb_ref, b_emb_ref, w_trans_ref, e_ref, v1_ref):
    x = x_ref[...]                                            # (TN, L) f32
    e = jnp.tanh(jnp.dot(x.astype(jnp.bfloat16), w_emb_ref[...],
                         preferred_element_type=jnp.float32)
                 + b_emb_ref[...])                            # (TN, D) f32
    e_ref[...] = e
    # Lane-dense logits: contract the D axis of W_trans (K, D) and E (TN, D).
    v1_ref[...] = lax.dot_general(w_trans_ref[...], e,
                                  dimension_numbers=(((1,), (1,)), ((), ())),
                                  preferred_element_type=jnp.float32)  # (K, TN)


# ---------------------------------------------------------------------------
# Tiled path, kernel 2: both column softmaxes computed ONCE at t == 0 from the
# resident (K, N_pad) logits into a (1, N_pad) scratch; the steady-state loop
# is x-tile DMA + one matmul + one lane-dense A store.  M is a resident
# accumulator output.
# ---------------------------------------------------------------------------
def _attend_pool_kernel(n_valid, tile_n, ragged,
                        v1_full_ref, w_deep_ref, x_ref,
                        a_ref, m_ref,
                        a2_ref):
    t = pl.program_id(0)

    @pl.when(t == 0)
    def _init():
        v1 = v1_full_ref[...]                                  # (K, N_pad)
        col = lax.broadcasted_iota(jnp.int32, v1.shape, 1)
        v1 = jnp.where(col < n_valid, v1, -jnp.inf)            # mask padded cols
        a1 = jnp.exp(v1 - jnp.max(v1, axis=1, keepdims=True))
        a1 = a1 / jnp.sum(a1, axis=1, keepdims=True)           # exact, once
        v2 = jnp.sum(a1 * w_deep_ref[...], axis=0, keepdims=True)   # (1, N_pad)
        col2 = lax.broadcasted_iota(jnp.int32, v2.shape, 1)
        v2 = jnp.where(col2 < n_valid, v2, -jnp.inf)
        a2 = jnp.exp(v2 - jnp.max(v2, axis=1, keepdims=True))
        a2 = a2 / jnp.sum(a2, axis=1, keepdims=True)           # exact, once
        a2_ref[...] = jnp.where(col2 < n_valid, a2, 0.0)       # zero padded cols
        m_ref[...] = jnp.zeros_like(m_ref)                     # init accumulator

    start = pl.multiple_of(t * tile_n, tile_n)
    a2_t = a2_ref[:, pl.ds(start, tile_n)]                     # (1, TN) lane dense
    a_ref[...] = a2_t

    x = x_ref[...]                                             # (TN, L) f32
    if ragged:
        # Last tile may read past the end of x (garbage / possibly NaN rows);
        # zero them so 0-weight rows cannot poison the accumulation.
        row = start + lax.broadcasted_iota(jnp.int32, (tile_n, 1), 0)
        x = jnp.where(row < n_valid, x, 0.0)
    # Pooling: M += a_tile @ x_tile.  Tiny f32 matmul (1 output row), fully
    # hidden under the x DMA; no bf16/f32 copy of the tile is materialized.
    m_ref[...] += jnp.dot(a2_t, x, preferred_element_type=jnp.float32)


# ---------------------------------------------------------------------------
# Wrapper
# ---------------------------------------------------------------------------
def datt_forward(x, w_emb, b_emb, w_trans, w_deep, *, tile_n=None, fuse=None):
    """x: (N, L).  PyTorch parameter layouts:
       w_emb (D, L), b_emb (D,), w_trans (K, D), w_deep (1, K)."""
    n, l = x.shape
    d = w_emb.shape[0]
    k = w_trans.shape[0]

    x = jnp.asarray(x, jnp.float32)
    # One-time tiny weight relayouts (L*D elements, negligible vs x traffic).
    w_emb_t = jnp.asarray(w_emb, jnp.bfloat16).T               # (L, D) bf16
    b_emb2 = jnp.asarray(b_emb, jnp.float32).reshape(1, d)     # (1, D)
    w_trans_f = jnp.asarray(w_trans, jnp.float32)              # (K, D)

    vmem_limit = 32 * 1024 * 1024

    if fuse is None:
        # Rough resident-VMEM estimate for the fused kernel (x + bf16 copy +
        # E + temps + logits), with headroom for the default double-buffering.
        fused_bytes = n * (6 * l + 8 * d + 8 * k) + 4 * l * d
        fuse = fused_bytes < 10 * 1024 * 1024

    # -------------------- fused single-block fast path ----------------------
    if fuse:
        w_deep_row = jnp.asarray(w_deep, jnp.float32).reshape(1, k)
        cost = pl.CostEstimate(
            flops=2 * n * l * d + 2 * n * d * k + 2 * n * l,
            transcendentals=n * d + 2 * n,
            bytes_accessed=n * l * 4 + l * d * 2 + n * d * 4 + n * 4 + l * 4)
        m, a_col, e = pl.pallas_call(
            _fused_kernel,
            out_shape=(jax.ShapeDtypeStruct((1, l), jnp.float32),   # M
                       jax.ShapeDtypeStruct((n, 1), jnp.float32),   # A (column)
                       jax.ShapeDtypeStruct((n, d), jnp.float32)),  # E
            grid=(1,),
            in_specs=[
                pl.BlockSpec((n, l), lambda i: (0, 0)),
                pl.BlockSpec((l, d), lambda i: (0, 0)),
                pl.BlockSpec((1, d), lambda i: (0, 0)),
                pl.BlockSpec((k, d), lambda i: (0, 0)),
                pl.BlockSpec((1, k), lambda i: (0, 0)),
            ],
            out_specs=(
                pl.BlockSpec((1, l), lambda i: (0, 0)),
                pl.BlockSpec((n, 1), lambda i: (0, 0)),
                pl.BlockSpec((n, d), lambda i: (0, 0)),
            ),
            compiler_params=pltpu.CompilerParams(
                dimension_semantics=("arbitrary",),
                vmem_limit_bytes=vmem_limit),
            cost_estimate=cost,
        )(x, w_emb_t, b_emb2, w_trans_f, w_deep_row)
        return m, a_col.reshape(1, n), e

    # -------------------------- tiled two-pass path --------------------------
    if tile_n is None:
        # >=512 rows keeps the x stream near the HBM roofline and fills the
        # 256-row MXU on v6e/v7x; double-buffered f32 x + E tiles stay well
        # under the 32 MiB scoped limit even at 2048 (fits v7x's 64 MiB VMEM).
        tile_n = 2048 if n >= 16384 else (1024 if n >= 4096 else 512)
    num_tiles = pl.cdiv(n, tile_n)
    n_pad = num_tiles * tile_n
    ragged = n_pad != n

    w_deep_col = jnp.asarray(w_deep, jnp.float32).reshape(k, 1)

    # Kernel 1: embedding + lane-dense attention logits.
    cost1 = pl.CostEstimate(
        flops=2 * n_pad * l * d + 2 * n_pad * d * k,
        transcendentals=n_pad * d,
        bytes_accessed=n * l * 4 + l * d * 2 + d * 4 + k * d * 4
                       + n * d * 4 + n_pad * k * 4)
    e, v1_row = pl.pallas_call(
        _embed_kernel,
        out_shape=(jax.ShapeDtypeStruct((n, d), jnp.float32),       # E (exact N)
                   jax.ShapeDtypeStruct((k, n_pad), jnp.float32)),  # V1 lane dense
        grid=(num_tiles,),
        in_specs=[
            pl.BlockSpec((tile_n, l), lambda t: (t, 0)),
            pl.BlockSpec((l, d), lambda t: (0, 0)),
            pl.BlockSpec((1, d), lambda t: (0, 0)),
            pl.BlockSpec((k, d), lambda t: (0, 0)),
        ],
        out_specs=(
            pl.BlockSpec((tile_n, d), lambda t: (t, 0)),
            pl.BlockSpec((k, tile_n), lambda t: (0, t)),
        ),
        compiler_params=pltpu.CompilerParams(
            dimension_semantics=("parallel",),
            vmem_limit_bytes=vmem_limit),
        cost_estimate=cost1,
    )(x, w_emb_t, b_emb2, w_trans_f)

    # Kernel 2: both column softmaxes (once) + attention pooling (accumulated).
    # TODO(synk): for very large bags on v7x a 2D (L-parallel, N-arbitrary)
    # grid would let both TensorCores stream x; single-core is kept for
    # simplicity since the loop is HBM-bound.
    cost2 = pl.CostEstimate(
        flops=2 * n_pad * l + 8 * n_pad * k,
        transcendentals=2 * n_pad * k + 2 * n_pad,
        bytes_accessed=n * l * 4 + n_pad * k * 4 + n_pad * 4 + l * 4)
    kernel2 = functools.partial(_attend_pool_kernel, n, tile_n, ragged)
    a_row, m = pl.pallas_call(
        kernel2,
        out_shape=(jax.ShapeDtypeStruct((1, n_pad), jnp.float32),   # A lane dense
                   jax.ShapeDtypeStruct((1, l), jnp.float32)),      # M
        grid=(num_tiles,),
        in_specs=[
            pl.BlockSpec((k, n_pad), lambda t: (0, 0)),    # resident full logits
            pl.BlockSpec((k, 1), lambda t: (0, 0)),        # w_deep column
            pl.BlockSpec((tile_n, l), lambda t: (t, 0)),   # x tile (f32)
        ],
        out_specs=(
            pl.BlockSpec((1, tile_n), lambda t: (0, t)),   # lane-dense A tiles
            pl.BlockSpec((1, l), lambda t: (0, 0)),        # resident M accumulator
        ),
        scratch_shapes=[
            pltpu.VMEM((1, n_pad), jnp.float32),           # final attention row
        ],
        compiler_params=pltpu.CompilerParams(
            dimension_semantics=("arbitrary",),
            vmem_limit_bytes=vmem_limit),
        cost_estimate=cost2,
    )(v1_row, w_deep_col, x)

    return m, a_row[:, :n], e


# ---------------------------------------------------------------------------
# Pure-JAX reference (mirrors the PyTorch module in f32).
# ---------------------------------------------------------------------------
def _reference(x, w_emb, b_emb, w_trans, w_deep):
    e = jnp.tanh(x @ w_emb.T + b_emb)
    v = e @ w_trans.T
    a1 = jax.nn.softmax(v, axis=0)
    v2 = a1 @ w_deep.T
    a2 = jax.nn.softmax(v2, axis=0).reshape(1, -1)
    m = a2 @ x
    return m, a2, e


if __name__ == "__main__":
    # Module defaults: L=512, D=128, K=1.
    L, D, K = 512, 128, 1

    key = jax.random.PRNGKey(0)
    kx1, kx2, k1, k2, k3, k4 = jax.random.split(key, 6)

    def uinit(kk, shape, fan_in):   # PyTorch nn.Linear default init
        bound = 1.0 / (fan_in ** 0.5)
        return jax.random.uniform(kk, shape, jnp.float32, -bound, bound)

    w_emb = uinit(k1, (D, L), L)
    b_emb = uinit(k2, (D,), L)
    w_trans = uinit(k3, (K, D), D)
    w_deep = uinit(k4, (1, K), K)

    def check(x_in, m, a, e):
        m_r, a_r, e_r = _reference(x_in, w_emb, b_emb, w_trans, w_deep)
        n_in = x_in.shape[0]
        assert m.shape == (1, L) and a.shape == (1, n_in) and e.shape == (n_in, D)
        # bf16 x@W_emb loosens tolerances vs the f32 reference.
        assert jnp.allclose(e, e_r, atol=3e-2), float(jnp.max(jnp.abs(e - e_r)))
        assert jnp.allclose(a, a_r, rtol=3e-2, atol=1e-6), float(jnp.max(jnp.abs(a - a_r)))
        assert jnp.allclose(m, m_r, atol=1e-2, rtol=1e-2), float(jnp.max(jnp.abs(m - m_r)))

    # Small bag (N=300, not a tile multiple) -> fused single-block fast path.
    x_small = jax.random.normal(kx1, (300, L), jnp.float32)
    fwd = jax.jit(datt_forward)
    m, a, e = fwd(x_small, w_emb, b_emb, w_trans, w_deep)
    jax.block_until_ready((m, a, e))
    check(x_small, m, a, e)

    # Larger ragged bag -> two-kernel tiled path (exercises the ragged last
    # tile masking and the resident-accumulator loop).
    x_big = jax.random.normal(kx2, (700, L), jnp.float32)
    fwd_tiled = jax.jit(functools.partial(datt_forward, tile_n=256, fuse=False))
    m2, a2, e2 = fwd_tiled(x_big, w_emb, b_emb, w_trans, w_deep)
    jax.block_until_ready((m2, a2, e2))
    check(x_big, m2, a2, e2)

    print("KERNEL_OK")
</pallas_src>

<mosaic_0001>
module attributes {stable_mosaic.version = 11 : i64} {
  func.func @_fused_kernel(%arg0: i32, %arg1: memref<300x512xf32, #tpu.memory_space<vmem>>, %arg2: memref<512x128xbf16, #tpu.memory_space<vmem>>, %arg3: memref<1x128xf32, #tpu.memory_space<vmem>>, %arg4: memref<1x128xf32, #tpu.memory_space<vmem>>, %arg5: memref<1x1xf32, #tpu.memory_space<vmem>>, %arg6: memref<1x512xf32, #tpu.memory_space<vmem>>, %arg7: memref<300x1xf32, #tpu.memory_space<vmem>>, %arg8: memref<300x128xf32, #tpu.memory_space<vmem>>) attributes {dimension_semantics = [#tpu.dimension_semantics<arbitrary>], iteration_bounds = array<i64: 1>, scalar_prefetch = 0 : i64, scratch_operands = 0 : i64, tpu.core_type = #tpu.core_type<tc>, window_params = [{pipeline_mode = #tpu.pipeline_mode<synchronous>, transform_indices = @transform_0, window_bounds = array<i64: 300, 512>}, {pipeline_mode = #tpu.pipeline_mode<synchronous>, transform_indices = @transform_1, window_bounds = array<i64: 512, 128>}, {pipeline_mode = #tpu.pipeline_mode<synchronous>, transform_indices = @transform_2, window_bounds = array<i64: 1, 128>}, {pipeline_mode = #tpu.pipeline_mode<synchronous>, transform_indices = @transform_3, window_bounds = array<i64: 1, 128>}, {pipeline_mode = #tpu.pipeline_mode<synchronous>, transform_indices = @transform_4, window_bounds = array<i64: 1, 1>}, {pipeline_mode = #tpu.pipeline_mode<synchronous>, transform_indices = @transform_5, window_bounds = array<i64: 1, 512>}, {pipeline_mode = #tpu.pipeline_mode<synchronous>, transform_indices = @transform_6, window_bounds = array<i64: 300, 1>}, {pipeline_mode = #tpu.pipeline_mode<synchronous>, transform_indices = @transform_7, window_bounds = array<i64: 300, 128>}]} {
    %c0 = arith.constant 0 : index
    %c0_0 = arith.constant 0 : index
    %0 = vector.load %arg1[%c0, %c0_0] : memref<300x512xf32, #tpu.memory_space<vmem>>, vector<300x512xf32>
    %1 = arith.truncf %0 : vector<300x512xf32> to vector<300x512xbf16>
    %c0_1 = arith.constant 0 : index
    %c0_2 = arith.constant 0 : index
    %2 = vector.load %arg2[%c0_1, %c0_2] : memref<512x128xbf16, #tpu.memory_space<vmem>>, vector<512x128xbf16>
    %cst = arith.constant dense<0.000000e+00> : vector<300x128xf32>
    %3 = tpu.matmul %1, %2, %cst {dimension_numbers = #tpu.dot_dimension_numbers<[1], [0], [0], [1], [0, 0, 1, 1], [], []>} : vector<300x512xbf16>, vector<512x128xbf16>, vector<300x128xf32> -> vector<300x128xf32>
    %c0_3 = arith.constant 0 : index
    %c0_4 = arith.constant 0 : index
    %4 = vector.load %arg3[%c0_3, %c0_4] : memref<1x128xf32, #tpu.memory_space<vmem>>, vector<1x128xf32>
    %5 = vector.broadcast %4 : vector<1x128xf32> to vector<300x128xf32>
    %6 = arith.addf %3, %5 : vector<300x128xf32>
    %7 = math.tanh %6 : vector<300x128xf32>
    %c0_5 = arith.constant 0 : index
    %c0_6 = arith.constant 0 : index
    %8 = vector.load %arg8[%c0_5, %c0_6] : memref<300x128xf32, #tpu.memory_space<vmem>>, vector<300x128xf32>
    tpu.vector_store %arg8[%c0_5, %c0_6], %7 {strides = array<i32>} : memref<300x128xf32, #tpu.memory_space<vmem>>, vector<300x128xf32>,
    %c0_7 = arith.constant 0 : index
    %c0_8 = arith.constant 0 : index
    %9 = vector.load %arg4[%c0_7, %c0_8] : memref<1x128xf32, #tpu.memory_space<vmem>>, vector<1x128xf32>
    %cst_9 = arith.constant dense<0.000000e+00> : vector<300x1xf32>
    %10 = tpu.matmul %7, %9, %cst_9 {dimension_numbers = #tpu.dot_dimension_numbers<[1], [1], [0], [0], [0, 0, 1, 0], [], []>} : vector<300x128xf32>, vector<1x128xf32>, vector<300x1xf32> -> vector<300x1xf32>
    %cst_10 = arith.constant dense<0xFF800000> : vector<1xf32>
    %11 = vector.multi_reduction <maximumf>, %10, %cst_10 [0] : vector<300x1xf32> to vector<1xf32>
    %12 = vector.shape_cast %11 : vector<1xf32> to vector<1x1xf32>
    %13 = vector.broadcast %12 : vector<1x1xf32> to vector<300x1xf32>
    %14 = arith.subf %10, %13 : vector<300x1xf32>
    %15 = math.exp %14 : vector<300x1xf32>
    %cst_11 = arith.constant dense<0.000000e+00> : vector<1xf32>
    %16 = vector.multi_reduction <add>, %15, %cst_11 [0] : vector<300x1xf32> to vector<1xf32>
    %17 = vector.shape_cast %16 : vector<1xf32> to vector<1x1xf32>
    %18 = vector.broadcast %17 : vector<1x1xf32> to vector<300x1xf32>
    %19 = arith.divf %15, %18 : vector<300x1xf32>
    %c0_12 = arith.constant 0 : index
    %c0_13 = arith.constant 0 : index
    %20 = vector.load %arg5[%c0_12, %c0_13] : memref<1x1xf32, #tpu.memory_space<vmem>>, vector<1x1xf32>
    %21 = vector.broadcast %20 : vector<1x1xf32> to vector<300x1xf32>
    %22 = arith.mulf %19, %21 : vector<300x1xf32>
    %cst_14 = arith.constant dense<0.000000e+00> : vector<300xf32>
    %23 = vector.multi_reduction <add>, %22, %cst_14 [1] : vector<300x1xf32> to vector<300xf32>
    %24 = vector.shape_cast %23 : vector<300xf32> to vector<300x1xf32>
    %cst_15 = arith.constant dense<0xFF800000> : vector<1xf32>
    %25 = vector.multi_reduction <maximumf>, %24, %cst_15 [0] : vector<300x1xf32> to vector<1xf32>
    %26 = vector.shape_cast %25 : vector<1xf32> to vector<1x1xf32>
    %27 = vector.broadcast %26 : vector<1x1xf32> to vector<300x1xf32>
    %28 = arith.subf %24, %27 : vector<300x1xf32>
    %29 = math.exp %28 : vector<300x1xf32>
    %cst_16 = arith.constant dense<0.000000e+00> : vector<1xf32>
    %30 = vector.multi_reduction <add>, %29, %cst_16 [0] : vector<300x1xf32> to vector<1xf32>
    %31 = vector.shape_cast %30 : vector<1xf32> to vector<1x1xf32>
    %32 = vector.broadcast %31 : vector<1x1xf32> to vector<300x1xf32>
    %33 = arith.divf %29, %32 : vector<300x1xf32>
    %c0_17 = arith.constant 0 : index
    %c0_18 = arith.constant 0 : index
    %34 = vector.load %arg7[%c0_17, %c0_18] : memref<300x1xf32, #tpu.memory_space<vmem>>, vector<300x1xf32>
    tpu.vector_store %arg7[%c0_17, %c0_18], %33 {strides = array<i32>} : memref<300x1xf32, #tpu.memory_space<vmem>>, vector<300x1xf32>,
    %35 = vector.broadcast %33 : vector<300x1xf32> to vector<300x512xf32>
    %36 = arith.mulf %35, %0 : vector<300x512xf32>
    %cst_19 = arith.constant dense<0.000000e+00> : vector<512xf32>
    %37 = vector.multi_reduction <add>, %36, %cst_19 [0] : vector<300x512xf32> to vector<512xf32>
    %38 = vector.shape_cast %37 : vector<512xf32> to vector<1x512xf32>
    %c0_20 = arith.constant 0 : index
    %c0_21 = arith.constant 0 : index
    %39 = vector.load %arg6[%c0_20, %c0_21] : memref<1x512xf32, #tpu.memory_space<vmem>>, vector<1x512xf32>
    tpu.vector_store %arg6[%c0_20, %c0_21], %38 {strides = array<i32>} : memref<1x512xf32, #tpu.memory_space<vmem>>, vector<1x512xf32>,
    return
  }
  func.func @transform_0(%arg0: i32) -> (i32, i32) {
    %c0_i32 = arith.constant 0 : i32
    %c0_i32_0 = arith.constant 0 : i32
    %c0_i32_1 = arith.constant 0 : i32
    return %c0_i32, %c0_i32_0 : i32, i32
  }
  func.func @transform_1(%arg0: i32) -> (i32, i32) {
    %c0_i32 = arith.constant 0 : i32
    %c0_i32_0 = arith.constant 0 : i32
    %c0_i32_1 = arith.constant 0 : i32
    return %c0_i32, %c0_i32_0 : i32, i32
  }
  func.func @transform_2(%arg0: i32) -> (i32, i32) {
    %c0_i32 = arith.constant 0 : i32
    %c0_i32_0 = arith.constant 0 : i32
    %c0_i32_1 = arith.constant 0 : i32
    return %c0_i32, %c0_i32_0 : i32, i32
  }
  func.func @transform_3(%arg0: i32) -> (i32, i32) {
    %c0_i32 = arith.constant 0 : i32
    %c0_i32_0 = arith.constant 0 : i32
    %c0_i32_1 = arith.constant 0 : i32
    return %c0_i32, %c0_i32_0 : i32, i32
  }
  func.func @transform_4(%arg0: i32) -> (i32, i32) {
    %c0_i32 = arith.constant 0 : i32
    %c0_i32_0 = arith.constant 0 : i32
    %c0_i32_1 = arith.constant 0 : i32
    return %c0_i32, %c0_i32_0 : i32, i32
  }
  func.func @transform_5(%arg0: i32) -> (i32, i32) {
    %c0_i32 = arith.constant 0 : i32
    %c0_i32_0 = arith.constant 0 : i32
    %c0_i32_1 = arith.constant 0 : i32
    return %c0_i32, %c0_i32_0 : i32, i32
  }
  func.func @transform_6(%arg0: i32) -> (i32, i32) {
    %c0_i32 = arith.constant 0 : i32
    %c0_i32_0 = arith.constant 0 : i32
    %c0_i32_1 = arith.constant 0 : i32
    return %c0_i32, %c0_i32_0 : i32, i32
  }
  func.func @transform_7(%arg0: i32) -> (i32, i32) {
    %c0_i32 = arith.constant 0 : i32
    %c0_i32_0 = arith.constant 0 : i32
    %c0_i32_1 = arith.constant 0 : i32
    return %c0_i32, %c0_i32_0 : i32, i32
  }
}

</mosaic_0001>

<llo_original>
// kernel: datt_forward.1
$region0: #{datt_forward.1}
  #allocation0 [shape = 'u32[]', space=smem, size = 0x4, offset = 0x4, fixed_abs, tag = 'smem constant byte address 0x4 - core index']
  #allocation1 [shape = 'u32[144,128]{1,0:T(1,128)}', space=vmem, size = 0x12000, scoped, tag = 'internal scratch']
  #allocation2 [shape = 'f32[1,1]{1,0:T(1,128)S(1)}', space=vmem, size = 0x200, scoped, tag = 'scoped memory for datt_forward.1']
  %s0 = inlined_call_operand.hbm [shape: f32[300,512], index: 0, kind: input, shape index: {}]
  %s1 = inlined_call_operand.vmem [shape: bf16[512,128], index: 1, kind: input, shape index: {}]
  %s2 = inlined_call_operand.vmem [shape: f32[1,128], index: 2, kind: input, shape index: {}]
  %s3 = inlined_call_operand.vmem [shape: f32[1,128], index: 3, kind: input, shape index: {}]
  %s4 = inlined_call_operand.<no memory space> [shape: f32[1,1], index: 4, kind: input, shape index: {}]
  %s5 = inlined_call_operand.hbm [shape: f32[1,512], index: 5, kind: output, shape index: {0}]
  %s6 = inlined_call_operand.vmem [shape: f32[300,1], index: 6, kind: output, shape index: {1}]
  %s7 = inlined_call_operand.hbm [shape: f32[300,128], index: 7, kind: output, shape index: {2}]
  %8 = xla_tuple %s5, %s6, %s7
  %s9 = sld [smem:[#allocation0]]
  $region50: #{datt_forward.1} parent=0
    _
  %s11 = ssub.s32 1, %s9
  %s12 = scalar_select 0, %s11, %s9
  %v13 = vstv %s4
  %14 = vst [vmem:[#allocation2] sm:$0x1] %v13
  $region1: #{datt_forward.1} parent=0
    #allocation3 [shape = 'u8[622592]{0}', space=vmem, size = 0x98000, scoped, tag = 'input window, operand 0, single buffered']
    #allocation4 [shape = 's32[1]{0}', space=sflag, size = 0x4, scoped, tag = 'scoped memory for datt_forward.1']
    #allocation5 [shape = 's32[1]{0}', space=sflag, size = 0x4, scoped, tag = 'scoped memory for datt_forward.1']
    #allocation6 [shape = 'u8[2048]{0}', space=vmem, size = 0x800, scoped, tag = 'output window, operand 0, single buffered']
    #allocation7 [shape = 'u8[155648]{0}', space=vmem, size = 0x26000, scoped, tag = 'output window, operand 2, single buffered']
    #allocation8 [shape = 's32[1]{0}', space=sflag, size = 0x4, scoped, tag = 'scoped memory for datt_forward.1']
    %15 = vsyncpa [#allocation4], 0
    %16 = vsyncpa [#allocation5], 0
    %17 = vsyncpa [#allocation8], 0
    // Predicated region
    $region2: #{datt_forward.1} parent=1 // pred_check
      _
    $region3: #{datt_forward.1} parent=1 // pred_check_branch
      %19 = sbr.rel (0) target = $region5
    $region4: #{datt_forward.1} parent=1 // pred_region
      %s21 = ssub.s32 19456, 19456
      %22 = vsyncadd [#allocation4], %s21
      %s23 = sshll.u32 [#allocation3], 4
      %s24 = int_to_ptr.vmem [resolvable:$true] %s23
      %29 = dma.hbm_to_vmem [thread:$0]  %s0, 19456, %s24, [#allocation4], 512, 512, 32
    $region5: #{datt_forward.1} parent=1 // pred_fallthru
      _
    // Predicated region
    $region6: #{datt_forward.1} parent=1 // pred_check
      _
    $region7: #{datt_forward.1} parent=1 // pred_check_branch
      %31 = sbr.rel (0) target = $region9
    $region8: #{datt_forward.1} parent=1 // pred_region
      _
    $region9: #{datt_forward.1} parent=1 // pred_fallthru
      _
    // Predicated region
    $region10: #{datt_forward.1} parent=1 // pred_check
      _
    $region11: #{datt_forward.1} parent=1 // pred_check_branch
      %33 = sbr.rel (0) target = $region13
    $region12: #{datt_forward.1} parent=1 // pred_region
      _
    $region13: #{datt_forward.1} parent=1 // pred_fallthru
      _
    // Predicated region
    $region14: #{datt_forward.1} parent=1 // pred_check
      _
    $region15: #{datt_forward.1} parent=1 // pred_check_branch
      %35 = sbr.rel (0) target = $region17
    $region16: #{datt_forward.1} parent=1 // pred_region
      _
    $region17: #{datt_forward.1} parent=1 // pred_fallthru
      _
    // Predicated region
    $region18: #{datt_forward.1} parent=1 // pred_check
      _
    $region19: #{datt_forward.1} parent=1 // pred_check_branch
      %37 = sbr.rel (0) target = $region21
    $region20: #{datt_forward.1} parent=1 // pred_region
      _
    $region21: #{datt_forward.1} parent=1 // pred_fallthru
      _
    // Predicated region
    $region22: #{datt_forward.1} parent=1 // pred_check
      _
    $region23: #{datt_forward.1} parent=1 // pred_check_branch
      %39 = sbr.rel (0) target = $region25
    $region24: #{datt_forward.1} parent=1 // pred_region
      %40 = dma.done [#allocation4], 19456
    $region25: #{datt_forward.1} parent=1 // pred_fallthru
      _
    %v42 = vld [vmem:[#allocation3] sm:$0xff]
    %v43 = vld [vmem:[#allocation3 + $0x8] sm:$0xff]
    %v44 = vld [vmem:[#allocation3 + $0x10] sm:$0xff]
    %v45 = vld [vmem:[#allocation3 + $0x18] sm:$0xff]
    %v46 = vld [vmem:[#allocation3 + $0x20] sm:$0xff]
    %v47 = vld [vmem:[#allocation3 + $0x28] sm:$0xff]
    %v48 = vld [vmem:[#allocation3 + $0x30] sm:$0xff]
    %v49 = vld [vmem:[#allocation3 + $0x38] sm:$0xff]
    %v50 = vld [vmem:[#allocation3 + $0x40] sm:$0xff]
    %v51 = vld [vmem:[#allocation3 + $0x48] sm:$0xff]
    %v52 = vld [vmem:[#allocation3 + $0x50] sm:$0xff]
    %v53 = vld [vmem:[#allocation3 + $0x58] sm:$0xff]
    %v54 = vld [vmem:[#allocation3 + $0x60] sm:$0xff]
    %v55 = vld [vmem:[#allocation3 + $0x68] sm:$0xff]
    %v56 = vld [vmem:[#allocation3 + $0x70] sm:$0xff]
    %v57 = vld [vmem:[#allocation3 + $0x78] sm:$0xff]
    %v58 = vld [vmem:[#allocation3 + $0x80] sm:$0xff]
    %v59 = vld [vmem:[#allocation3 + $0x88] sm:$0xff]
    %v60 = vld [vmem:[#allocation3 + $0x90] sm:$0xff]
    %v61 = vld [vmem:[#allocation3 + $0x98] sm:$0xff]
    %v62 = vld [vmem:[#allocation3 + $0xa0] sm:$0xff]
    %v63 = vld [vmem:[#allocation3 + $0xa8] sm:$0xff]
    %v64 = vld [vmem:[#allocation3 + $0xb0] sm:$0xff]
    %v65 = vld [vmem:[#allocation3 + $0xb8] sm:$0xff]
    %v66 = vld [vmem:[#allocation3 + $0xc0] sm:$0xff]
    %v67 = vld [vmem:[#allocation3 + $0xc8] sm:$0xff]
    %v68 = vld [vmem:[#allocation3 + $0xd0] sm:$0xff]
    %v69 = vld [vmem:[#allocation3 + $0xd8] sm:$0xff]
    %v70 = vld [vmem:[#allocation3 + $0xe0] sm:$0xff]
    %v71 = vld [vmem:[#allocation3 + $0xe8] sm:$0xff]
    %v72 = vld [vmem:[#allocation3 + $0xf0] sm:$0xff]
    %v73 = vld [vmem:[#allocation3 + $0xf8] sm:$0xff]
    %v74 = vld [vmem:[#allocation3 + $0x100] sm:$0xff]
    %v75 = vld [vmem:[#allocation3 + $0x108] sm:$0xff]
    %v76 = vld [vmem:[#allocation3 + $0x110] sm:$0xff]
    %v77 = vld [vmem:[#allocation3 + $0x118] sm:$0xff]
    %v78 = vld [vmem:[#allocation3 + $0x120] sm:$0xff]
    %v79 = vld [vmem:[#allocation3 + $0x128] sm:$0xff]
    %v80 = vld [vmem:[#allocation3 + $0x130] sm:$0xff]
    %v81 = vld [vmem:[#allocation3 + $0x138] sm:$0xff]
    %v82 = vld [vmem:[#allocation3 + $0x140] sm:$0xff]
    %v83 = vld [vmem:[#allocation3 + $0x148] sm:$0xff]
    %v84 = vld [vmem:[#allocation3 + $0x150] sm:$0xff]
    %v85 = vld [vmem:[#allocation3 + $0x158] sm:$0xff]
    %v86 = vld [vmem:[#allocation3 + $0x160] sm:$0xff]
    %v87 = vld [vmem:[#allocation3 + $0x168] sm:$0xff]
    %v88 = vld [vmem:[#allocation3 + $0x170] sm:$0xff]
    %v89 = vld [vmem:[#allocation3 + $0x178] sm:$0xff]
    %v90 = vld [vmem:[#allocation3 + $0x180] sm:$0xff]
    %v91 = vld [vmem:[#allocation3 + $0x188] sm:$0xff]
    %v92 = vld [vmem:[#allocation3 + $0x190] sm:$0xff]
    %v93 = vld [vmem:[#allocation3 + $0x198] sm:$0xff]
    %v94 = vld [vmem:[#allocation3 + $0x1a0] sm:$0xff]
    %v95 = vld [vmem:[#allocation3 + $0x1a8] sm:$0xff]
    %v96 = vld [vmem:[#allocation3 + $0x1b0] sm:$0xff]
    %v97 = vld [vmem:[#allocation3 + $0x1b8] sm:$0xff]
    %v98 = vld [vmem:[#allocation3 + $0x1c0] sm:$0xff]
    %v99 = vld [vmem:[#allocation3 + $0x1c8] sm:$0xff]
    %v100 = vld [vmem:[#allocation3 + $0x1d0] sm:$0xff]
    %v101 = vld [vmem:[#allocation3 + $0x1d8] sm:$0xff]
    %v102 = vld [vmem:[#allocation3 + $0x1e0] sm:$0xff]
    %v103 = vld [vmem:[#allocation3 + $0x1e8] sm:$0xff]
    %v104 = vld [vmem:[#allocation3 + $0x1f0] sm:$0xff]
    %v105 = vld [vmem:[#allocation3 + $0x1f8] sm:$0xff]
    %v106 = vld [vmem:[#allocation3 + $0x200] sm:$0xff]
    %v107 = vld [vmem:[#allocation3 + $0x208] sm:$0xff]
    %v108 = vld [vmem:[#allocation3 + $0x210] sm:$0xff]
    %v109 = vld [vmem:[#allocation3 + $0x218] sm:$0xff]
    %v110 = vld [vmem:[#allocation3 + $0x220] sm:$0xff]
    %v111 = vld [vmem:[#allocation3 + $0x228] sm:$0xff]
    %v112 = vld [vmem:[#allocation3 + $0x230] sm:$0xff]
    %v113 = vld [vmem:[#allocation3 + $0x238] sm:$0xff]
    %v114 = vld [vmem:[#allocation3 + $0x240] sm:$0xff]
    %v115 = vld [vmem:[#allocation3 + $0x248] sm:$0xff]
    %v116 = vld [vmem:[#allocation3 + $0x250] sm:$0xff]
    %v117 = vld [vmem:[#allocation3 + $0x258] sm:$0xff]
    %v118 = vld [vmem:[#allocation3 + $0x260] sm:$0xff]
    %v119 = vld [vmem:[#allocation3 + $0x268] sm:$0xff]
    %v120 = vld [vmem:[#allocation3 + $0x270] sm:$0xff]
    %v121 = vld [vmem:[#allocation3 + $0x278] sm:$0xff]
    %v122 = vld [vmem:[#allocation3 + $0x280] sm:$0xff]
    %v123 = vld [vmem:[#allocation3 + $0x288] sm:$0xff]
    %v124 = vld [vmem:[#allocation3 + $0x290] sm:$0xff]
    %v125 = vld [vmem:[#allocation3 + $0x298] sm:$0xff]
    %v126 = vld [vmem:[#allocation3 + $0x2a0] sm:$0xff]
    %v127 = vld [vmem:[#allocation3 + $0x2a8] sm:$0xff]
    %v128 = vld [vmem:[#allocation3 + $0x2b0] sm:$0xff]
    %v129 = vld [vmem:[#allocation3 + $0x2b8] sm:$0xff]
    %v130 = vld [vmem:[#allocation3 + $0x2c0] sm:$0xff]
    %v131 = vld [vmem:[#allocation3 + $0x2c8] sm:$0xff]
    %v132 = vld [vmem:[#allocation3 + $0x2d0] sm:$0xff]
    %v133 = vld [vmem:[#allocation3 + $0x2d8] sm:$0xff]
    %v134 = vld [vmem:[#allocation3 + $0x2e0] sm:$0xff]
    %v135 = vld [vmem:[#allocation3 + $0x2e8] sm:$0xff]
    %v136 = vld [vmem:[#allocation3 + $0x2f0] sm:$0xff]
    %v137 = vld [vmem:[#allocation3 + $0x2f8] sm:$0xff]
    %v138 = vld [vmem:[#allocation3 + $0x300] sm:$0xff]
    %v139 = vld [vmem:[#allocation3 + $0x308] sm:$0xff]
    %v140 = vld [vmem:[#allocation3 + $0x310] sm:$0xff]
    %v141 = vld [vmem:[#allocation3 + $0x318] sm:$0xff]
    %v142 = vld [vmem:[#allocation3 + $0x320] sm:$0xff]
    %v143 = vld [vmem:[#allocation3 + $0x328] sm:$0xff]
    %v144 = vld [vmem:[#allocation3 + $0x330] sm:$0xff]
    %v145 = vld [vmem:[#allocation3 + $0x338] sm:$0xff]
    %v146 = vld [vmem:[#allocation3 + $0x340] sm:$0xff]
    %v147 = vld [vmem:[#allocation3 + $0x348] sm:$0xff]
    %v148 = vld [vmem:[#allocation3 + $0x350] sm:$0xff]
    %v149 = vld [vmem:[#allocation3 + $0x358] sm:$0xff]
    %v150 = vld [vmem:[#allocation3 + $0x360] sm:$0xff]
    %v151 = vld [vmem:[#allocation3 + $0x368] sm:$0xff]
    %v152 = vld [vmem:[#allocation3 + $0x370] sm:$0xff]
    %v153 = vld [vmem:[#allocation3 + $0x378] sm:$0xff]
    %v154 = vld [vmem:[#allocation3 + $0x380] sm:$0xff]
    %v155 = vld [vmem:[#allocation3 + $0x388] sm:$0xff]
    %v156 = vld [vmem:[#allocation3 + $0x390] sm:$0xff]
    %v157 = vld [vmem:[#allocation3 + $0x398] sm:$0xff]
    %v158 = vld [vmem:[#allocation3 + $0x3a0] sm:$0xff]
    %v159 = vld [vmem:[#allocation3 + $0x3a8] sm:$0xff]
    %v160 = vld [vmem:[#allocation3 + $0x3b0] sm:$0xff]
    %v161 = vld [vmem:[#allocation3 + $0x3b8] sm:$0xff]
    %v162 = vld [vmem:[#allocation3 + $0x3c0] sm:$0xff]
    %v163 = vld [vmem:[#allocation3 + $0x3c8] sm:$0xff]
    %v164 = vld [vmem:[#allocation3 + $0x3d0] sm:$0xff]
    %v165 = vld [vmem:[#allocation3 + $0x3d8] sm:$0xff]
    %v166 = vld [vmem:[#allocation3 + $0x3e0] sm:$0xff]
    %v167 = vld [vmem:[#allocation3 + $0x3e8] sm:$0xff]
    %v168 = vld [vmem:[#allocation3 + $0x3f0] sm:$0xff]
    %v169 = vld [vmem:[#allocation3 + $0x3f8] sm:$0xff]
    %v170 = vld [vmem:[#allocation3 + $0x400] sm:$0xff]
    %v171 = vld [vmem:[#allocation3 + $0x408] sm:$0xff]
    %v172 = vld [vmem:[#allocation3 + $0x410] sm:$0xff]
    %v173 = vld [vmem:[#allocation3 + $0x418] sm:$0xff]
    %v174 = vld [vmem:[#allocation3 + $0x420] sm:$0xff]
    %v175 = vld [vmem:[#allocation3 + $0x428] sm:$0xff]
    %v176 = vld [vmem:[#allocation3 + $0x430] sm:$0xff]
    %v177 = vld [vmem:[#allocation3 + $0x438] sm:$0xff]
    %v178 = vld [vmem:[#allocation3 + $0x440] sm:$0xff]
    %v179 = vld [vmem:[#allocation3 + $0x448] sm:$0xff]
    %v180 = vld [vmem:[#allocation3 + $0x450] sm:$0xff]
    %v181 = vld [vmem:[#allocation3 + $0x458] sm:$0xff]
    %v182 = vld [vmem:[#allocation3 + $0x460] sm:$0xff]
    %v183 = vld [vmem:[#allocation3 + $0x468] sm:$0xff]
    %v184 = vld [vmem:[#allocation3 + $0x470] sm:$0xff]
    %v185 = vld [vmem:[#allocation3 + $0x478] sm:$0xff]
    %v186 = vld [vmem:[#allocation3 + $0x480] sm:$0xff]
    %v187 = vld [vmem:[#allocation3 + $0x488] sm:$0xff]
    %v188 = vld [vmem:[#allocation3 + $0x490] sm:$0xff]
    %v189 = vld [vmem:[#allocation3 + $0x498] sm:$0xff]
    %v190 = vld [vmem:[#allocation3 + $0x4a0] sm:$0xf]
    %v191 = vld [vmem:[#allocation3 + $0x4a8] sm:$0xf]
    %v192 = vld [vmem:[#allocation3 + $0x4b0] sm:$0xf]
    %v193 = vld [vmem:[#allocation3 + $0x4b8] sm:$0xf]
    %v194 = vpack.c.bf16 %v46, %v42
    %v195 = vpack.c.bf16 %v47, %v43
    %v196 = vpack.c.bf16 %v48, %v44
    %v197 = vpack.c.bf16 %v49, %v45
    %v198 = vpack.c.bf16 %v54, %v50
    %v199 = vpack.c.bf16 %v55, %v51
    %v200 = vpack.c.bf16 %v56, %v52
    %v201 = vpack.c.bf16 %v57, %v53
    %v202 = vpack.c.bf16 %v62, %v58
    %v203 = vpack.c.bf16 %v63, %v59
    %v204 = vpack.c.bf16 %v64, %v60
    %v205 = vpack.c.bf16 %v65, %v61
    %v206 = vpack.c.bf16 %v70, %v66
    %v207 = vpack.c.bf16 %v71, %v67
    %v208 = vpack.c.bf16 %v72, %v68
    %v209 = vpack.c.bf16 %v73, %v69
    %v210 = vpack.c.bf16 %v78, %v74
    %v211 = vpack.c.bf16 %v79, %v75
    %v212 = vpack.c.bf16 %v80, %v76
    %v213 = vpack.c.bf16 %v81, %v77
    %v214 = vpack.c.bf16 %v86, %v82
    %v215 = vpack.c.bf16 %v87, %v83
    %v216 = vpack.c.bf16 %v88, %v84
    %v217 = vpack.c.bf16 %v89, %v85
    %v218 = vpack.c.bf16 %v94, %v90
    %v219 = vpack.c.bf16 %v95, %v91
    %v220 = vpack.c.bf16 %v96, %v92
    %v221 = vpack.c.bf16 %v97, %v93
    %v222 = vpack.c.bf16 %v102, %v98
    %v223 = vpack.c.bf16 %v103, %v99
    %v224 = vpack.c.bf16 %v104, %v100
    %v225 = vpack.c.bf16 %v105, %v101
    %v226 = vpack.c.bf16 %v110, %v106
    %v227 = vpack.c.bf16 %v111, %v107
    %v228 = vpack.c.bf16 %v112, %v108
    %v229 = vpack.c.bf16 %v113, %v109
    %v230 = vpack.c.bf16 %v118, %v114
    %v231 = vpack.c.bf16 %v119, %v115
    %v232 = vpack.c.bf16 %v120, %v116
    %v233 = vpack.c.bf16 %v121, %v117
    %v234 = vpack.c.bf16 %v126, %v122
    %v235 = vpack.c.bf16 %v127, %v123
    %v236 = vpack.c.bf16 %v128, %v124
    %v237 = vpack.c.bf16 %v129, %v125
    %v238 = vpack.c.bf16 %v134, %v130
    %v239 = vpack.c.bf16 %v135, %v131
    %v240 = vpack.c.bf16 %v136, %v132
    %v241 = vpack.c.bf16 %v137, %v133
    %v242 = vpack.c.bf16 %v142, %v138
    %v243 = vpack.c.bf16 %v143, %v139
    %v244 = vpack.c.bf16 %v144, %v140
    %v245 = vpack.c.bf16 %v145, %v141
    %v246 = vpack.c.bf16 %v150, %v146
    %v247 = vpack.c.bf16 %v151, %v147
    %v248 = vpack.c.bf16 %v152, %v148
    %v249 = vpack.c.bf16 %v153, %v149
    %v250 = vpack.c.bf16 %v158, %v154
    %v251 = vpack.c.bf16 %v159, %v155
    %v252 = vpack.c.bf16 %v160, %v156
    %v253 = vpack.c.bf16 %v161, %v157
    %v254 = vpack.c.bf16 %v166, %v162
    %v255 = vpack.c.bf16 %v167, %v163
    %v256 = vpack.c.bf16 %v168, %v164
    %v257 = vpack.c.bf16 %v169, %v165
    %v258 = vpack.c.bf16 %v174, %v170
    %v259 = vpack.c.bf16 %v175, %v171
    %v260 = vpack.c.bf16 %v176, %v172
    %v261 = vpack.c.bf16 %v177, %v173
    %v262 = vpack.c.bf16 %v182, %v178
    %v263 = vpack.c.bf16 %v183, %v179
    %v264 = vpack.c.bf16 %v184, %v180
    %v265 = vpack.c.bf16 %v185, %v181
    %v266 = vpack.c.bf16 %v190, %v186
    %v267 = vpack.c.bf16 %v191, %v187
    %v268 = vpack.c.bf16 %v192, %v188
    %v269 = vpack.c.bf16 %v193, %v189
    %v270 = vld [vmem:[%s1] sm:$0xf]
    %v271 = vld [vmem:[%s1 + $0x4] sm:$0xf]
    %v272 = vld [vmem:[%s1 + $0x8] sm:$0xf]
    %v273 = vld [vmem:[%s1 + $0xc] sm:$0xf]
    %v274 = vld [vmem:[%s1 + $0x10] sm:$0xf]
    %v275 = vld [vmem:[%s1 + $0x14] sm:$0xf]
    %v276 = vld [vmem:[%s1 + $0x18] sm:$0xf]
    %v277 = vld [vmem:[%s1 + $0x1c] sm:$0xf]
    %v278 = vld [vmem:[%s1 + $0x20] sm:$0xf]
    %v279 = vld [vmem:[%s1 + $0x24] sm:$0xf]
    %v280 = vld [vmem:[%s1 + $0x28] sm:$0xf]
    %v281 = vld [vmem:[%s1 + $0x2c] sm:$0xf]
    %v282 = vld [vmem:[%s1 + $0x30] sm:$0xf]
    %v283 = vld [vmem:[%s1 + $0x34] sm:$0xf]
    %v284 = vld [vmem:[%s1 + $0x38] sm:$0xf]
    %v285 = vld [vmem:[%s1 + $0x3c] sm:$0xf]
    %v286 = vld [vmem:[%s1 + $0x40] sm:$0xf]
    %v287 = vld [vmem:[%s1 + $0x44] sm:$0xf]
    %v288 = vld [vmem:[%s1 + $0x48] sm:$0xf]
    %v289 = vld [vmem:[%s1 + $0x4c] sm:$0xf]
    %v290 = vld [vmem:[%s1 + $0x50] sm:$0xf]
    %v291 = vld [vmem:[%s1 + $0x54] sm:$0xf]
    %v292 = vld [vmem:[%s1 + $0x58] sm:$0xf]
    %v293 = vld [vmem:[%s1 + $0x5c] sm:$0xf]
    %v294 = vld [vmem:[%s1 + $0x60] sm:$0xf]
    %v295 = vld [vmem:[%s1 + $0x64] sm:$0xf]
    %v296 = vld [vmem:[%s1 + $0x68] sm:$0xf]
    %v297 = vld [vmem:[%s1 + $0x6c] sm:$0xf]
    %v298 = vld [vmem:[%s1 + $0x70] sm:$0xf]
    %v299 = vld [vmem:[%s1 + $0x74] sm:$0xf]
    %v300 = vld [vmem:[%s1 + $0x78] sm:$0xf]
    %v301 = vld [vmem:[%s1 + $0x7c] sm:$0xf]
    %v302 = vld [vmem:[%s1 + $0x80] sm:$0xf]
    %v303 = vld [vmem:[%s1 + $0x84] sm:$0xf]
    %v304 = vld [vmem:[%s1 + $0x88] sm:$0xf]
    %v305 = vld [vmem:[%s1 + $0x8c] sm:$0xf]
    %v306 = vld [vmem:[%s1 + $0x90] sm:$0xf]
    %v307 = vld [vmem:[%s1 + $0x94] sm:$0xf]
    %v308 = vld [vmem:[%s1 + $0x98] sm:$0xf]
    %v309 = vld [vmem:[%s1 + $0x9c] sm:$0xf]
    %v310 = vld [vmem:[%s1 + $0xa0] sm:$0xf]
    %v311 = vld [vmem:[%s1 + $0xa4] sm:$0xf]
    %v312 = vld [vmem:[%s1 + $0xa8] sm:$0xf]
    %v313 = vld [vmem:[%s1 + $0xac] sm:$0xf]
    %v314 = vld [vmem:[%s1 + $0xb0] sm:$0xf]
    %v315 = vld [vmem:[%s1 + $0xb4] sm:$0xf]
    %v316 = vld [vmem:[%s1 + $0xb8] sm:$0xf]
    %v317 = vld [vmem:[%s1 + $0xbc] sm:$0xf]
    %v318 = vld [vmem:[%s1 + $0xc0] sm:$0xf]
    %v319 = vld [vmem:[%s1 + $0xc4] sm:$0xf]
    %v320 = vld [vmem:[%s1 + $0xc8] sm:$0xf]
    %v321 = vld [vmem:[%s1 + $0xcc] sm:$0xf]
    %v322 = vld [vmem:[%s1 + $0xd0] sm:$0xf]
    %v323 = vld [vmem:[%s1 + $0xd4] sm:$0xf]
    %v324 = vld [vmem:[%s1 + $0xd8] sm:$0xf]
    %v325 = vld [vmem:[%s1 + $0xdc] sm:$0xf]
    %v326 = vld [vmem:[%s1 + $0xe0] sm:$0xf]
    %v327 = vld [vmem:[%s1 + $0xe4] sm:$0xf]
    %v328 = vld [vmem:[%s1 + $0xe8] sm:$0xf]
    %v329 = vld [vmem:[%s1 + $0xec] sm:$0xf]
    %v330 = vld [vmem:[%s1 + $0xf0] sm:$0xf]
    %v331 = vld [vmem:[%s1 + $0xf4] sm:$0xf]
    %v332 = vld [vmem:[%s1 + $0xf8] sm:$0xf]
    %v333 = vld [vmem:[%s1 + $0xfc] sm:$0xf]
    %v334 = vld [vmem:[%s2] sm:$0x1]
    %v336 = vlaneseq
    %v337 = vshrl.u32 %v336, 7
    %v338 = vsub.s32 0, %v337
    %v339 = vrot.slane %v334, %v338
    %v405 = vunpack.c.l.b16 %v270
    %v406 = vunpack.c.l.b16 %v271
    %v407 = vunpack.c.l.b16 %v272
    %v408 = vunpack.c.l.b16 %v273
    %v409 = vunpack.c.l.b16 %v274
    %v410 = vunpack.c.l.b16 %v275
    %v411 = vunpack.c.l.b16 %v276
    %v412 = vunpack.c.l.b16 %v277
    %v413 = vunpack.c.l.b16 %v278
    %v414 = vunpack.c.l.b16 %v279
    %v415 = vunpack.c.l.b16 %v280
    %v416 = vunpack.c.l.b16 %v281
    %v417 = vunpack.c.l.b16 %v282
    %v418 = vunpack.c.l.b16 %v283
    %v419 = vunpack.c.l.b16 %v284
    %v420 = vunpack.c.l.b16 %v285
    %v421 = vunpack.c.l.b16 %v286
    %v422 = vunpack.c.l.b16 %v287
    %v423 = vunpack.c.l.b16 %v288
    %v424 = vunpack.c.l.b16 %v289
    %v425 = vunpack.c.l.b16 %v290
    %v426 = vunpack.c.l.b16 %v291
    %v427 = vunpack.c.l.b16 %v292
    %v428 = vunpack.c.l.b16 %v293
    %v429 = vunpack.c.l.b16 %v294
    %v430 = vunpack.c.l.b16 %v295
    %v431 = vunpack.c.l.b16 %v296
    %v432 = vunpack.c.l.b16 %v297
    %v433 = vunpack.c.l.b16 %v298
    %v434 = vunpack.c.l.b16 %v299
    %v435 = vunpack.c.l.b16 %v300
    %v436 = vunpack.c.l.b16 %v301
    %v437 = vunpack.c.l.b16 %v302
    %v438 = vunpack.c.l.b16 %v303
    %v439 = vunpack.c.l.b16 %v304
    %v440 = vunpack.c.l.b16 %v305
    %v441 = vunpack.c.l.b16 %v306
    %v442 = vunpack.c.l.b16 %v307
    %v443 = vunpack.c.l.b16 %v308
    %v444 = vunpack.c.l.b16 %v309
    %v445 = vunpack.c.l.b16 %v310
    %v446 = vunpack.c.l.b16 %v311
    %v447 = vunpack.c.l.b16 %v312
    %v448 = vunpack.c.l.b16 %v313
    %v449 = vunpack.c.l.b16 %v314
    %v450 = vunpack.c.l.b16 %v315
    %v451 = vunpack.c.l.b16 %v316
    %v452 = vunpack.c.l.b16 %v317
    %v453 = vunpack.c.l.b16 %v318
    %v454 = vunpack.c.l.b16 %v319
    %v455 = vunpack.c.l.b16 %v320
    %v456 = vunpack.c.l.b16 %v321
    %v457 = vunpack.c.l.b16 %v322
    %v458 = vunpack.c.l.b16 %v323
    %v459 = vunpack.c.l.b16 %v324
    %v460 = vunpack.c.l.b16 %v325
    %v461 = vunpack.c.l.b16 %v326
    %v462 = vunpack.c.l.b16 %v327
    %v463 = vunpack.c.l.b16 %v328
    %v464 = vunpack.c.l.b16 %v329
    %v465 = vunpack.c.l.b16 %v330
    %v466 = vunpack.c.l.b16 %v331
    %v467 = vunpack.c.l.b16 %v332
    %v468 = vunpack.c.l.b16 %v333
    %v469 = vpack.c.b16 %v406, %v405
    %v470 = vpack.c.b16 %v408, %v407
    %v471 = vpack.c.b16 %v410, %v409
    %v472 = vpack.c.b16 %v412, %v411
    %v473 = vpack.c.b16 %v414, %v413
    %v474 = vpack.c.b16 %v416, %v415
    %v475 = vpack.c.b16 %v418, %v417
    %v476 = vpack.c.b16 %v420, %v419
    %v477 = vpack.c.b16 %v422, %v421
    %v478 = vpack.c.b16 %v424, %v423
    %v479 = vpack.c.b16 %v426, %v425
    %v480 = vpack.c.b16 %v428, %v427
    %v481 = vpack.c.b16 %v430, %v429
    %v482 = vpack.c.b16 %v432, %v431
    %v483 = vpack.c.b16 %v434, %v433
    %v484 = vpack.c.b16 %v436, %v435
    %v485 = vpack.c.b16 %v438, %v437
    %v486 = vpack.c.b16 %v440, %v439
    %v487 = vpack.c.b16 %v442, %v441
    %v488 = vpack.c.b16 %v444, %v443
    %v489 = vpack.c.b16 %v446, %v445
    %v490 = vpack.c.b16 %v448, %v447
    %v491 = vpack.c.b16 %v450, %v449
    %v492 = vpack.c.b16 %v452, %v451
    %v493 = vpack.c.b16 %v454, %v453
    %v494 = vpack.c.b16 %v456, %v455
    %v495 = vpack.c.b16 %v458, %v457
    %v496 = vpack.c.b16 %v460, %v459
    %v497 = vpack.c.b16 %v462, %v461
    %v498 = vpack.c.b16 %v464, %v463
    %v499 = vpack.c.b16 %v466, %v465
    %v500 = vpack.c.b16 %v468, %v467
    %533 = vmatprep.subr.bf16.mxu0 0
    %534 = vmatpush1.bf16.msra.mxu0 %v469
    %535 = vmatprep.subr.bf16.mxu0 0
    %536 = vmatpush1.bf16.msra.mxu0 %v470
    %537 = vmatprep.subr.bf16.mxu0 0
    %538 = vmatpush1.bf16.msra.mxu0 %v471
    %539 = vmatprep.subr.bf16.mxu0 0
    %540 = vmatpush1.bf16.msra.mxu0 %v472
    %541 = vmatprep.subr.bf16.mxu0 0
    %542 = vmatpush1.bf16.msra.mxu0 %v473
    %543 = vmatprep.subr.bf16.mxu0 0
    %544 = vmatpush1.bf16.msra.mxu0 %v474
    %545 = vmatprep.subr.bf16.mxu0 0
    %546 = vmatpush1.bf16.msra.mxu0 %v475
    %547 = vmatprep.subr.bf16.mxu0 0
    %548 = vmatpush1.bf16.msra.mxu0 %v476
    %549 = vmatprep.subr.bf16.mxu0 0
    %550 = vmatpush1.bf16.msra.mxu0 %v477
    %551 = vmatprep.subr.bf16.mxu0 0
    %552 = vmatpush1.bf16.msra.mxu0 %v478
    %553 = vmatprep.subr.bf16.mxu0 0
    %554 = vmatpush1.bf16.msra.mxu0 %v479
    %555 = vmatprep.subr.bf16.mxu0 0
    %556 = vmatpush1.bf16.msra.mxu0 %v480
    %557 = vmatprep.subr.bf16.mxu0 0
    %558 = vmatpush1.bf16.msra.mxu0 %v481
    %559 = vmatprep.subr.bf16.mxu0 0
    %560 = vmatpush1.bf16.msra.mxu0 %v482
    %561 = vmatprep.subr.bf16.mxu0 0
    %562 = vmatpush1.bf16.msra.mxu0 %v483
    %563 = vmatprep.subr.bf16.mxu0 0
    %564 = vmatpush1.bf16.msra.mxu0 %v484
    %565 = vmatprep.mubr.bf16.mxu0 %v195
    %566 = vmatmul.mubr.bf16.gmra.mrb[0].mxu0 %v194
    %v567 = vpop.f32.mrb[0].mxu0
    %v568 = vadd.f32 %v339, %v567
    %v569 = vpop.f32.mrb[0].mxu0
    %v570 = vpop.f32.mrb[0].mxu0
    %v571 = vadd.f32 %v339, %v570
    %v572 = vpop.f32.mrb[0].mxu0
    %573 = vmatprep.mubr.bf16.mxu0 %v199
    %574 = vmatmul.mubr.bf16.gmra.mrb[0].mxu0 %v198
    %v575 = vpop.f32.mrb[0].mxu0
    %v576 = vadd.f32 %v339, %v575
    %v577 = vpop.f32.mrb[0].mxu0
    %v578 = vpop.f32.mrb[0].mxu0
    %v579 = vadd.f32 %v339, %v578
    %v580 = vpop.f32.mrb[0].mxu0
    %581 = vmatprep.mubr.bf16.mxu0 %v203
    %582 = vmatmul.mubr.bf16.gmra.mrb[0].mxu0 %v202
    %v583 = vpop.f32.mrb[0].mxu0
    %v584 = vadd.f32 %v339, %v583
    %v585 = vpop.f32.mrb[0].mxu0
    %v586 = vpop.f32.mrb[0].mxu0
    %v587 = vadd.f32 %v339, %v586
    %v588 = vpop.f32.mrb[0].mxu0
    %589 = vmatprep.mubr.bf16.mxu0 %v207
    %590 = vmatmul.mubr.bf16.gmra.mrb[0].mxu0 %v206
    %v591 = vpop.f32.mrb[0].mxu0
    %v592 = vadd.f32 %v339, %v591
    %v593 = vpop.f32.mrb[0].mxu0
    %v594 = vpop.f32.mrb[0].mxu0
    %v595 = vadd.f32 %v339, %v594
    %v596 = vpop.f32.mrb[0].mxu0
    %597 = vmatprep.mubr.bf16.mxu0 %v211
    %598 = vmatmul.mubr.bf16.gmra.mrb[0].mxu0 %v210
    %v599 = vpop.f32.mrb[0].mxu0
    %v600 = vadd.f32 %v339, %v599
    %v601 = vpop.f32.mrb[0].mxu0
    %v602 = vpop.f32.mrb[0].mxu0
    %v603 = vadd.f32 %v339, %v602
    %v604 = vpop.f32.mrb[0].mxu0
    %605 = vmatprep.mubr.bf16.mxu0 %v215
    %606 = vmatmul.mubr.bf16.gmra.mrb[0].mxu0 %v214
    %v607 = vpop.f32.mrb[0].mxu0
    %v608 = vadd.f32 %v339, %v607
    %v609 = vpop.f32.mrb[0].mxu0
    %v610 = vpop.f32.mrb[0].mxu0
    %v611 = vadd.f32 %v339, %v610
    %v612 = vpop.f32.mrb[0].mxu0
    %613 = vmatprep.mubr.bf16.mxu0 %v219
    %614 = vmatmul.mubr.bf16.gmra.mrb[0].mxu0 %v218
    %v615 = vpop.f32.mrb[0].mxu0
    %v616 = vadd.f32 %v339, %v615
    %v617 = vpop.f32.mrb[0].mxu0
    %v618 = vpop.f32.mrb[0].mxu0
    %v619 = vadd.f32 %v339, %v618
    %v620 = vpop.f32.mrb[0].mxu0
    %621 = vmatprep.mubr.bf16.mxu0 %v223
    %622 = vmatmul.mubr.bf16.gmra.mrb[0].mxu0 %v222
    %v623 = vpop.f32.mrb[0].mxu0
    %v624 = vadd.f32 %v339, %v623
    %v625 = vpop.f32.mrb[0].mxu0
    %v626 = vpop.f32.mrb[0].mxu0
    %v627 = vadd.f32 %v339, %v626
    %v628 = vpop.f32.mrb[0].mxu0
    %629 = vmatprep.mubr.bf16.mxu0 %v227
    %630 = vmatmul.mubr.bf16.gmra.mrb[0].mxu0 %v226
    %v631 = vpop.f32.mrb[0].mxu0
    %v632 = vadd.f32 %v339, %v631
    %v633 = vpop.f32.mrb[0].mxu0
    %v634 = vpop.f32.mrb[0].mxu0
    %v635 = vadd.f32 %v339, %v634
    %v636 = vpop.f32.mrb[0].mxu0
    %637 = vmatprep.mubr.bf16.mxu0 %v231
    %638 = vmatmul.mubr.bf16.gmra.mrb[0].mxu0 %v230
    %v639 = vpop.f32.mrb[0].mxu0
    %v640 = vadd.f32 %v339, %v639
    %v641 = vpop.f32.mrb[0].mxu0
    %v642 = vpop.f32.mrb[0].mxu0
    %v643 = vadd.f32 %v339, %v642
    %v644 = vpop.f32.mrb[0].mxu0
    %645 = vmatprep.mubr.bf16.mxu0 %v235
    %646 = vmatmul.mubr.bf16.gmra.mrb[0].mxu0 %v234
    %v647 = vpop.f32.mrb[0].mxu0
    %v648 = vadd.f32 %v339, %v647
    %v649 = vpop.f32.mrb[0].mxu0
    %v650 = vpop.f32.mrb[0].mxu0
    %v651 = vadd.f32 %v339, %v650
    %v652 = vpop.f32.mrb[0].mxu0
    %653 = vmatprep.mubr.bf16.mxu0 %v239
    %654 = vmatmul.mubr.bf16.gmra.mrb[0].mxu0 %v238
    %v655 = vpop.f32.mrb[0].mxu0
    %v656 = vadd.f32 %v339, %v655
    %v657 = vpop.f32.mrb[0].mxu0
    %v658 = vpop.f32.mrb[0].mxu0
    %v659 = vadd.f32 %v339, %v658
    %v660 = vpop.f32.mrb[0].mxu0
    %661 = vmatprep.mubr.bf16.mxu0 %v243
    %662 = vmatmul.mubr.bf16.gmra.mrb[0].mxu0 %v242
    %v663 = vpop.f32.mrb[0].mxu0
    %v664 = vadd.f32 %v339, %v663
    %v665 = vpop.f32.mrb[0].mxu0
    %v666 = vpop.f32.mrb[0].mxu0
    %v667 = vadd.f32 %v339, %v666
    %v668 = vpop.f32.mrb[0].mxu0
    %669 = vmatprep.mubr.bf16.mxu0 %v247
    %670 = vmatmul.mubr.bf16.gmra.mrb[0].mxu0 %v246
    %v671 = vpop.f32.mrb[0].mxu0
    %v672 = vadd.f32 %v339, %v671
    %v673 = vpop.f32.mrb[0].mxu0
    %v674 = vpop.f32.mrb[0].mxu0
    %v675 = vadd.f32 %v339, %v674
    %v676 = vpop.f32.mrb[0].mxu0
    %677 = vmatprep.mubr.bf16.mxu0 %v251
    %678 = vmatmul.mubr.bf16.gmra.mrb[0].mxu0 %v250
    %v679 = vpop.f32.mrb[0].mxu0
    %v680 = vadd.f32 %v339, %v679
    %v681 = vpop.f32.mrb[0].mxu0
    %v682 = vpop.f32.mrb[0].mxu0
    %v683 = vadd.f32 %v339, %v682
    %v684 = vpop.f32.mrb[0].mxu0
    %685 = vmatprep.mubr.bf16.mxu0 %v255
    %686 = vmatmul.mubr.bf16.gmra.mrb[0].mxu0 %v254
    %v687 = vpop.f32.mrb[0].mxu0
    %v688 = vadd.f32 %v339, %v687
    %v689 = vpop.f32.mrb[0].mxu0
    %v690 = vpop.f32.mrb[0].mxu0
    %v691 = vadd.f32 %v339, %v690
    %v692 = vpop.f32.mrb[0].mxu0
    %693 = vmatprep.mubr.bf16.mxu0 %v259
    %694 = vmatmul.mubr.bf16.gmra.mrb[0].mxu0 %v258
    %v695 = vpop.f32.mrb[0].mxu0
    %v696 = vadd.f32 %v339, %v695
    %v697 = vpop.f32.mrb[0].mxu0
    %v698 = vpop.f32.mrb[0].mxu0
    %v699 = vadd.f32 %v339, %v698
    %v700 = vpop.f32.mrb[0].mxu0
    %701 = vmatprep.mubr.bf16.mxu0 %v263
    %702 = vmatmul.mubr.bf16.gmra.mrb[0].mxu0 %v262
    %v703 = vpop.f32.mrb[0].mxu0
    %v704 = vadd.f32 %v339, %v703
    %v705 = vpop.f32.mrb[0].mxu0
    %v706 = vpop.f32.mrb[0].mxu0
    %v707 = vadd.f32 %v339, %v706
    %v708 = vpop.f32.mrb[0].mxu0
    %709 = vmatprep.mubr.bf16.mxu0 %v267
    %710 = vmatmul.mubr.bf16.gmra.mrb[0].mxu0 %v266
    %v711 = vpop.f32.mrb[0].mxu0
    %v712 = vadd.f32 %v339, %v711
    %v713 = vpop.f32.mrb[0].mxu0
    %v714 = vpop.f32.mrb[0].mxu0
    %v715 = vadd.f32 %v339, %v714
    %v716 = vpop.f32.mrb[0].mxu0
    %717 = vdwg.mxu0
    %718 = vmatprep.subr.bf16.mxu0 0
    %719 = vmatpush1.bf16.msra.mxu0 %v485
    %720 = vmatprep.subr.bf16.mxu0 0
    %721 = vmatpush1.bf16.msra.mxu0 %v486
    %722 = vmatprep.subr.bf16.mxu0 0
    %723 = vmatpush1.bf16.msra.mxu0 %v487
    %724 = vmatprep.subr.bf16.mxu0 0
    %725 = vmatpush1.bf16.msra.mxu0 %v488
    %726 = vmatprep.subr.bf16.mxu0 0
    %727 = vmatpush1.bf16.msra.mxu0 %v489
    %728 = vmatprep.subr.bf16.mxu0 0
    %729 = vmatpush1.bf16.msra.mxu0 %v490
    %730 = vmatprep.subr.bf16.mxu0 0
    %731 = vmatpush1.bf16.msra.mxu0 %v491
    %732 = vmatprep.subr.bf16.mxu0 0
    %733 = vmatpush1.bf16.msra.mxu0 %v492
    %734 = vmatprep.subr.bf16.mxu0 0
    %735 = vmatpush1.bf16.msra.mxu0 %v493
    %736 = vmatprep.subr.bf16.mxu0 0
    %737 = vmatpush1.bf16.msra.mxu0 %v494
    %738 = vmatprep.subr.bf16.mxu0 0
    %739 = vmatpush1.bf16.msra.mxu0 %v495
    %740 = vmatprep.subr.bf16.mxu0 0
    %741 = vmatpush1.bf16.msra.mxu0 %v496
    %742 = vmatprep.subr.bf16.mxu0 0
    %743 = vmatpush1.bf16.msra.mxu0 %v497
    %744 = vmatprep.subr.bf16.mxu0 0
    %745 = vmatpush1.bf16.msra.mxu0 %v498
    %746 = vmatprep.subr.bf16.mxu0 0
    %747 = vmatpush1.bf16.msra.mxu0 %v499
    %748 = vmatprep.subr.bf16.mxu0 0
    %749 = vmatpush1.bf16.msra.mxu0 %v500
    %750 = vmatprep.mubr.bf16.mxu0 %v197
    %751 = vmatmul.mubr.bf16.gmra.mrb[0].mxu0 %v196
    %v752 = vpop.f32.mrb[0].mxu0
    %v753 = vadd.f32 %v568, %v752
    %v754 = vpop.f32.mrb[0].mxu0
    %v755 = vpop.f32.mrb[0].mxu0
    %v756 = vadd.f32 %v571, %v755
    %v757 = vpop.f32.mrb[0].mxu0
    %758 = vmatprep.mubr.bf16.mxu0 %v201
    %759 = vmatmul.mubr.bf16.gmra.mrb[0].mxu0 %v200
    %v760 = vpop.f32.mrb[0].mxu0
    %v761 = vadd.f32 %v576, %v760
    %v762 = vpop.f32.mrb[0].mxu0
    %v763 = vpop.f32.mrb[0].mxu0
    %v764 = vadd.f32 %v579, %v763
    %v765 = vpop.f32.mrb[0].mxu0
    %766 = vmatprep.mubr.bf16.mxu0 %v205
    %767 = vmatmul.mubr.bf16.gmra.mrb[0].mxu0 %v204
    %v768 = vpop.f32.mrb[0].mxu0
    %v769 = vadd.f32 %v584, %v768
    %v770 = vpop.f32.mrb[0].mxu0
    %v771 = vpop.f32.mrb[0].mxu0
    %v772 = vadd.f32 %v587, %v771
    %v773 = vpop.f32.mrb[0].mxu0
    %774 = vmatprep.mubr.bf16.mxu0 %v209
    %775 = vmatmul.mubr.bf16.gmra.mrb[0].mxu0 %v208
    %v776 = vpop.f32.mrb[0].mxu0
    %v777 = vadd.f32 %v592, %v776
    %v778 = vpop.f32.mrb[0].mxu0
    %v779 = vpop.f32.mrb[0].mxu0
    %v780 = vadd.f32 %v595, %v779
    %v781 = vpop.f32.mrb[0].mxu0
    %782 = vmatprep.mubr.bf16.mxu0 %v213
    %783 = vmatmul.mubr.bf16.gmra.mrb[0].mxu0 %v212
    %v784 = vpop.f32.mrb[0].mxu0
    %v785 = vadd.f32 %v600, %v784
    %v786 = vpop.f32.mrb[0].mxu0
    %v787 = vpop.f32.mrb[0].mxu0
    %v788 = vadd.f32 %v603, %v787
    %v789 = vpop.f32.mrb[0].mxu0
    %790 = vmatprep.mubr.bf16.mxu0 %v217
    %791 = vmatmul.mubr.bf16.gmra.mrb[0].mxu0 %v216
    %v792 = vpop.f32.mrb[0].mxu0
    %v793 = vadd.f32 %v608, %v792
    %v794 = vpop.f32.mrb[0].mxu0
    %v795 = vpop.f32.mrb[0].mxu0
    %v796 = vadd.f32 %v611, %v795
    %v797 = vpop.f32.mrb[0].mxu0
    %798 = vmatprep.mubr.bf16.mxu0 %v221
    %799 = vmatmul.mubr.bf16.gmra.mrb[0].mxu0 %v220
    %v800 = vpop.f32.mrb[0].mxu0
    %v801 = vadd.f32 %v616, %v800
    %v802 = vpop.f32.mrb[0].mxu0
    %v803 = vpop.f32.mrb[0].mxu0
    %v804 = vadd.f32 %v619, %v803
    %v805 = vpop.f32.mrb[0].mxu0
    %806 = vmatprep.mubr.bf16.mxu0 %v225
    %807 = vmatmul.mubr.bf16.gmra.mrb[0].mxu0 %v224
    %v808 = vpop.f32.mrb[0].mxu0
    %v809 = vadd.f32 %v624, %v808
    %v810 = vpop.f32.mrb[0].mxu0
    %v811 = vpop.f32.mrb[0].mxu0
    %v812 = vadd.f32 %v627, %v811
    %v813 = vpop.f32.mrb[0].mxu0
    %814 = vmatprep.mubr.bf16.mxu0 %v229
    %815 = vmatmul.mubr.bf16.gmra.mrb[0].mxu0 %v228
    %v816 = vpop.f32.mrb[0].mxu0
    %v817 = vadd.f32 %v632, %v816
    %v818 = vpop.f32.mrb[0].mxu0
    %v819 = vpop.f32.mrb[0].mxu0
    %v820 = vadd.f32 %v635, %v819
    %v821 = vpop.f32.mrb[0].mxu0
    %822 = vmatprep.mubr.bf16.mxu0 %v233
    %823 = vmatmul.mubr.bf16.gmra.mrb[0].mxu0 %v232
    %v824 = vpop.f32.mrb[0].mxu0
    %v825 = vadd.f32 %v640, %v824
    %v826 = vpop.f32.mrb[0].mxu0
    %v827 = vpop.f32.mrb[0].mxu0
    %v828 = vadd.f32 %v643, %v827
    %v829 = vpop.f32.mrb[0].mxu0
    %830 = vmatprep.mubr.bf16.mxu0 %v237
    %831 = vmatmul.mubr.bf16.gmra.mrb[0].mxu0 %v236
    %v832 = vpop.f32.mrb[0].mxu0
    %v833 = vadd.f32 %v648, %v832
    %v834 = vpop.f32.mrb[0].mxu0
    %v835 = vpop.f32.mrb[0].mxu0
    %v836 = vadd.f32 %v651, %v835
    %v837 = vpop.f32.mrb[0].mxu0
    %838 = vmatprep.mubr.bf16.mxu0 %v241
    %839 = vmatmul.mubr.bf16.gmra.mrb[0].mxu0 %v240
    %v840 = vpop.f32.mrb[0].mxu0
    %v841 = vadd.f32 %v656, %v840
    %v842 = vpop.f32.mrb[0].mxu0
    %v843 = vpop.f32.mrb[0].mxu0
    %v844 = vadd.f32 %v659, %v843
    %v845 = vpop.f32.mrb[0].mxu0
    %846 = vmatprep.mubr.bf16.mxu0 %v245
    %847 = vmatmul.mubr.bf16.gmra.mrb[0].mxu0 %v244
    %v848 = vpop.f32.mrb[0].mxu0
    %v849 = vadd.f32 %v664, %v848
    %v850 = vpop.f32.mrb[0].mxu0
    %v851 = vpop.f32.mrb[0].mxu0
    %v852 = vadd.f32 %v667, %v851
    %v853 = vpop.f32.mrb[0].mxu0
    %854 = vmatprep.mubr.bf16.mxu0 %v249
    %855 = vmatmul.mubr.bf16.gmra.mrb[0].mxu0 %v248
    %v856 = vpop.f32.mrb[0].mxu0
    %v857 = vadd.f32 %v672, %v856
    %v858 = vpop.f32.mrb[0].mxu0
    %v859 = vpop.f32.mrb[0].mxu0
    %v860 = vadd.f32 %v675, %v859
    %v861 = vpop.f32.mrb[0].mxu0
    %862 = vmatprep.mubr.bf16.mxu0 %v253
    %863 = vmatmul.mubr.bf16.gmra.mrb[0].mxu0 %v252
    %v864 = vpop.f32.mrb[0].mxu0
    %v865 = vadd.f32 %v680, %v864
    %v866 = vpop.f32.mrb[0].mxu0
    %v867 = vpop.f32.mrb[0].mxu0
    %v868 = vadd.f32 %v683, %v867
    %v869 = vpop.f32.mrb[0].mxu0
    %870 = vmatprep.mubr.bf16.mxu0 %v257
    %871 = vmatmul.mubr.bf16.gmra.mrb[0].mxu0 %v256
    %v872 = vpop.f32.mrb[0].mxu0
    %v873 = vadd.f32 %v688, %v872
    %v874 = vpop.f32.mrb[0].mxu0
    %v875 = vpop.f32.mrb[0].mxu0
    %v876 = vadd.f32 %v691, %v875
    %v877 = vpop.f32.mrb[0].mxu0
    %878 = vmatprep.mubr.bf16.mxu0 %v261
    %879 = vmatmul.mubr.bf16.gmra.mrb[0].mxu0 %v260
    %v880 = vpop.f32.mrb[0].mxu0
    %v881 = vadd.f32 %v696, %v880
    %v882 = vpop.f32.mrb[0].mxu0
    %v883 = vpop.f32.mrb[0].mxu0
    %v884 = vadd.f32 %v699, %v883
    %v885 = vpop.f32.mrb[0].mxu0
    %886 = vmatprep.mubr.bf16.mxu0 %v265
    %887 = vmatmul.mubr.bf16.gmra.mrb[0].mxu0 %v264
    %v888 = vpop.f32.mrb[0].mxu0
    %v889 = vadd.f32 %v704, %v888
    %v890 = vpop.f32.mrb[0].mxu0
    %v891 = vpop.f32.mrb[0].mxu0
    %v892 = vadd.f32 %v707, %v891
    %v893 = vpop.f32.mrb[0].mxu0
    %894 = vmatprep.mubr.bf16.mxu0 %v269
    %895 = vmatmul.mubr.bf16.gmra.mrb[0].mxu0 %v268
    %v896 = vpop.f32.mrb[0].mxu0
    %v897 = vadd.f32 %v712, %v896
    %v898 = vpop.f32.mrb[0].mxu0
    %v899 = vpop.f32.mrb[0].mxu0
    %v900 = vadd.f32 %v715, %v899
    %v901 = vpop.f32.mrb[0].mxu0
    %902 = vdwg.mxu0
    %v903 = vtanh.pop %v753
    %v904 = vtanh.pop %v756
    %v905 = vtanh.pop %v761
    %v906 = vtanh.pop %v764
    %v907 = vtanh.pop %v769
    %v908 = vtanh.pop %v772
    %v909 = vtanh.pop %v777
    %v910 = vtanh.pop %v780
    %v911 = vtanh.pop %v785
    %v912 = vtanh.pop %v788
    %v913 = vtanh.pop %v793
    %v914 = vtanh.pop %v796
    %v915 = vtanh.pop %v801
    %v916 = vtanh.pop %v804
    %v917 = vtanh.pop %v809
    %v918 = vtanh.pop %v812
    %v919 = vtanh.pop %v817
    %v920 = vtanh.pop %v820
    %v921 = vtanh.pop %v825
    %v922 = vtanh.pop %v828
    %v923 = vtanh.pop %v833
    %v924 = vtanh.pop %v836
    %v925 = vtanh.pop %v841
    %v926 = vtanh.pop %v844
    %v927 = vtanh.pop %v849
    %v928 = vtanh.pop %v852
    %v929 = vtanh.pop %v857
    %v930 = vtanh.pop %v860
    %v931 = vtanh.pop %v865
    %v932 = vtanh.pop %v868
    %v933 = vtanh.pop %v873
    %v934 = vtanh.pop %v876
    %v935 = vtanh.pop %v881
    %v936 = vtanh.pop %v884
    %v937 = vtanh.pop %v889
    %v938 = vtanh.pop %v892
    %v939 = vtanh.pop %v897
    %v940 = vtanh.pop %v900
    %941 = vst [vmem:[#allocation7] sm:$0xff] %v903
    %942 = vst [vmem:[#allocation7 + $0x8] sm:$0xff] %v904
    %943 = vst [vmem:[#allocation7 + $0x10] sm:$0xff] %v905
    %944 = vst [vmem:[#allocation7 + $0x18] sm:$0xff] %v906
    %945 = vst [vmem:[#allocation7 + $0x20] sm:$0xff] %v907
    %946 = vst [vmem:[#allocation7 + $0x28] sm:$0xff] %v908
    %947 = vst [vmem:[#allocation7 + $0x30] sm:$0xff] %v909
    %948 = vst [vmem:[#allocation7 + $0x38] sm:$0xff] %v910
    %949 = vst [vmem:[#allocation7 + $0x40] sm:$0xff] %v911
    %950 = vst [vmem:[#allocation7 + $0x48] sm:$0xff] %v912
    %951 = vst [vmem:[#allocation7 + $0x50] sm:$0xff] %v913
    %952 = vst [vmem:[#allocation7 + $0x58] sm:$0xff] %v914
    %953 = vst [vmem:[#allocation7 + $0x60] sm:$0xff] %v915
    %954 = vst [vmem:[#allocation7 + $0x68] sm:$0xff] %v916
    %955 = vst [vmem:[#allocation7 + $0x70] sm:$0xff] %v917
    %956 = vst [vmem:[#allocation7 + $0x78] sm:$0xff] %v918
    %957 = vst [vmem:[#allocation7 + $0x80] sm:$0xff] %v919
    %958 = vst [vmem:[#allocation7 + $0x88] sm:$0xff] %v920
    %959 = vst [vmem:[#allocation7 + $0x90] sm:$0xff] %v921
    %960 = vst [vmem:[#allocation7 + $0x98] sm:$0xff] %v922
    %961 = vst [vmem:[#allocation7 + $0xa0] sm:$0xff] %v923
    %962 = vst [vmem:[#allocation7 + $0xa8] sm:$0xff] %v924
    %963 = vst [vmem:[#allocation7 + $0xb0] sm:$0xff] %v925
    %964 = vst [vmem:[#allocation7 + $0xb8] sm:$0xff] %v926
    %965 = vst [vmem:[#allocation7 + $0xc0] sm:$0xff] %v927
    %966 = vst [vmem:[#allocation7 + $0xc8] sm:$0xff] %v928
    %967 = vst [vmem:[#allocation7 + $0xd0] sm:$0xff] %v929
    %968 = vst [vmem:[#allocation7 + $0xd8] sm:$0xff] %v930
    %969 = vst [vmem:[#allocation7 + $0xe0] sm:$0xff] %v931
    %970 = vst [vmem:[#allocation7 + $0xe8] sm:$0xff] %v932
    %971 = vst [vmem:[#allocation7 + $0xf0] sm:$0xff] %v933
    %972 = vst [vmem:[#allocation7 + $0xf8] sm:$0xff] %v934
    %973 = vst [vmem:[#allocation7 + $0x100] sm:$0xff] %v935
    %974 = vst [vmem:[#allocation7 + $0x108] sm:$0xff] %v936
    %975 = vst [vmem:[#allocation7 + $0x110] sm:$0xff] %v937
    %976 = vst [vmem:[#allocation7 + $0x118] sm:$0xff] %v938
    %977 = vst [vmem:[#allocation7 + $0x120] sm:$0xff] %v939
    %978 = vst [vmem:[#allocation7 + $0x128] sm:$0xf] %v940
    %v979 = vld [vmem:[%s3] sm:$0x1]
    %v981 = vlaneseq
    %v982 = vshrl.u32 %v981, 7
    %v983 = vsub.s32 0, %v982
    %v984 = vrot.slane %v979, %v983
    %v986 = vmul.f32 %v903, %v984
    %v987 = vmul.f32 %v904, %v984
    %v988 = vmul.f32 %v905, %v984
    %v989 = vmul.f32 %v906, %v984
    %v990 = vmul.f32 %v907, %v984
    %v991 = vmul.f32 %v908, %v984
    %v992 = vmul.f32 %v909, %v984
    %v993 = vmul.f32 %v910, %v984
    %v994 = vmul.f32 %v911, %v984
    %v995 = vmul.f32 %v912, %v984
    %v996 = vmul.f32 %v913, %v984
    %v997 = vmul.f32 %v914, %v984
    %v998 = vmul.f32 %v915, %v984
    %v999 = vmul.f32 %v916, %v984
    %v1000 = vmul.f32 %v917, %v984
    %v1001 = vmul.f32 %v918, %v984
    %v1002 = vmul.f32 %v919, %v984
    %v1003 = vmul.f32 %v920, %v984
    %v1004 = vmul.f32 %v921, %v984
    %v1005 = vmul.f32 %v922, %v984
    %v1006 = vmul.f32 %v923, %v984
    %v1007 = vmul.f32 %v924, %v984
    %v1008 = vmul.f32 %v925, %v984
    %v1009 = vmul.f32 %v926, %v984
    %v1010 = vmul.f32 %v927, %v984
    %v1011 = vmul.f32 %v928, %v984
    %v1012 = vmul.f32 %v929, %v984
    %v1013 = vmul.f32 %v930, %v984
    %v1014 = vmul.f32 %v931, %v984
    %v1015 = vmul.f32 %v932, %v984
    %v1016 = vmul.f32 %v933, %v984
    %v1017 = vmul.f32 %v934, %v984
    %v1018 = vmul.f32 %v935, %v984
    %v1019 = vmul.f32 %v936, %v984
    %v1020 = vmul.f32 %v937, %v984
    %v1021 = vmul.f32 %v938, %v984
    %v1022 = vmul.f32 %v939, %v984
    %v1023 = vmul.f32 %v940, %v984
    %1024 = vadd.xlane.f32.xlu0 %v986
    %v1025 = vpop.xlane.xlu0 %1024
    %1026 = vadd.xlane.f32.xlu0 %v987
    %v1027 = vpop.xlane.xlu0 %1026
    %1028 = vadd.xlane.f32.xlu0 %v988
    %v1029 = vpop.xlane.xlu0 %1028
    %1030 = vadd.xlane.f32.xlu0 %v989
    %v1031 = vpop.xlane.xlu0 %1030
    %1032 = vadd.xlane.f32.xlu0 %v990
    %v1033 = vpop.xlane.xlu0 %1032
    %1034 = vadd.xlane.f32.xlu0 %v991
    %v1035 = vpop.xlane.xlu0 %1034
    %1036 = vadd.xlane.f32.xlu0 %v992
    %v1037 = vpop.xlane.xlu0 %1036
    %1038 = vadd.xlane.f32.xlu0 %v993
    %v1039 = vpop.xlane.xlu0 %1038
    %1040 = vadd.xlane.f32.xlu0 %v994
    %v1041 = vpop.xlane.xlu0 %1040
    %1042 = vadd.xlane.f32.xlu0 %v995
    %v1043 = vpop.xlane.xlu0 %1042
    %1044 = vadd.xlane.f32.xlu0 %v996
    %v1045 = vpop.xlane.xlu0 %1044
    %1046 = vadd.xlane.f32.xlu0 %v997
    %v1047 = vpop.xlane.xlu0 %1046
    %1048 = vadd.xlane.f32.xlu0 %v998
    %v1049 = vpop.xlane.xlu0 %1048
    %1050 = vadd.xlane.f32.xlu0 %v999
    %v1051 = vpop.xlane.xlu0 %1050
    %1052 = vadd.xlane.f32.xlu0 %v1000
    %v1053 = vpop.xlane.xlu0 %1052
    %1054 = vadd.xlane.f32.xlu0 %v1001
    %v1055 = vpop.xlane.xlu0 %1054
    %1056 = vadd.xlane.f32.xlu0 %v1002
    %v1057 = vpop.xlane.xlu0 %1056
    %1058 = vadd.xlane.f32.xlu0 %v1003
    %v1059 = vpop.xlane.xlu0 %1058
    %1060 = vadd.xlane.f32.xlu0 %v1004
    %v1061 = vpop.xlane.xlu0 %1060
    %1062 = vadd.xlane.f32.xlu0 %v1005
    %v1063 = vpop.xlane.xlu0 %1062
    %1064 = vadd.xlane.f32.xlu0 %v1006
    %v1065 = vpop.xlane.xlu0 %1064
    %1066 = vadd.xlane.f32.xlu0 %v1007
    %v1067 = vpop.xlane.xlu0 %1066
    %1068 = vadd.xlane.f32.xlu0 %v1008
    %v1069 = vpop.xlane.xlu0 %1068
    %1070 = vadd.xlane.f32.xlu0 %v1009
    %v1071 = vpop.xlane.xlu0 %1070
    %1072 = vadd.xlane.f32.xlu0 %v1010
    %v1073 = vpop.xlane.xlu0 %1072
    %1074 = vadd.xlane.f32.xlu0 %v1011
    %v1075 = vpop.xlane.xlu0 %1074
    %1076 = vadd.xlane.f32.xlu0 %v1012
    %v1077 = vpop.xlane.xlu0 %1076
    %1078 = vadd.xlane.f32.xlu0 %v1013
    %v1079 = vpop.xlane.xlu0 %1078
    %1080 = vadd.xlane.f32.xlu0 %v1014
    %v1081 = vpop.xlane.xlu0 %1080
    %1082 = vadd.xlane.f32.xlu0 %v1015
    %v1083 = vpop.xlane.xlu0 %1082
    %1084 = vadd.xlane.f32.xlu0 %v1016
    %v1085 = vpop.xlane.xlu0 %1084
    %1086 = vadd.xlane.f32.xlu0 %v1017
    %v1087 = vpop.xlane.xlu0 %1086
    %1088 = vadd.xlane.f32.xlu0 %v1018
    %v1089 = vpop.xlane.xlu0 %1088
    %1090 = vadd.xlane.f32.xlu0 %v1019
    %v1091 = vpop.xlane.xlu0 %1090
    %1092 = vadd.xlane.f32.xlu0 %v1020
    %v1093 = vpop.xlane.xlu0 %1092
    %1094 = vadd.xlane.f32.xlu0 %v1021
    %v1095 = vpop.xlane.xlu0 %1094
    %1096 = vadd.xlane.f32.xlu0 %v1022
    %v1097 = vpop.xlane.xlu0 %1096
    %vm1098 = vcmask 1043456
    %v1099 = vsel %vm1098, %v1023, 0.0
    %1100 = vadd.xlane.f32.xlu0 %v1099
    %v1101 = vpop.xlane.xlu0 %1100
    %v1102 = vmax.f32 %v1025, %v1033
    %v1103 = vmax.f32 %v1027, %v1035
    %v1104 = vmax.f32 %v1029, %v1037
    %v1105 = vmax.f32 %v1031, %v1039
    %v1106 = vmax.f32 %v1102, %v1041
    %v1107 = vmax.f32 %v1103, %v1043
    %v1108 = vmax.f32 %v1104, %v1045
    %v1109 = vmax.f32 %v1105, %v1047
    %v1110 = vmax.f32 %v1106, %v1049
    %v1111 = vmax.f32 %v1107, %v1051
    %v1112 = vmax.f32 %v1108, %v1053
    %v1113 = vmax.f32 %v1109, %v1055
    %v1114 = vmax.f32 %v1110, %v1057
    %v1115 = vmax.f32 %v1111, %v1059
    %v1116 = vmax.f32 %v1112, %v1061
    %v1117 = vmax.f32 %v1113, %v1063
    %v1118 = vmax.f32 %v1114, %v1065
    %v1119 = vmax.f32 %v1115, %v1067
    %v1120 = vmax.f32 %v1116, %v1069
    %v1121 = vmax.f32 %v1117, %v1071
    %v1122 = vmax.f32 %v1118, %v1073
    %v1123 = vmax.f32 %v1119, %v1075
    %v1124 = vmax.f32 %v1120, %v1077
    %v1125 = vmax.f32 %v1121, %v1079
    %v1126 = vmax.f32 %v1122, %v1081
    %v1127 = vmax.f32 %v1123, %v1083
    %v1128 = vmax.f32 %v1124, %v1085
    %v1129 = vmax.f32 %v1125, %v1087
    %v1130 = vmax.f32 %v1126, %v1089
    %v1131 = vmax.f32 %v1127, %v1091
    %v1132 = vmax.f32 %v1128, %v1093
    %v1133 = vmax.f32 %v1129, %v1095
    %v1134 = vmax.f32 %v1130, %v1097
    %v1135 = vsel %vm1098, %v1101, -inf
    %v1136 = vmax.f32 %v1131, %v1135
    %v1137 = vmax.f32 %v1134, %v1136
    %v1138 = vmax.f32 %v1132, %v1133
    %v1139 = vmax.f32 %v1137, %v1138
    %v1140 = vrot.slane %v1139, 4
    %v1141 = vmax.f32 %v1139, %v1140
    %v1142 = vrot.slane %v1141, 2
    %v1143 = vmax.f32 %v1141, %v1142
    %v1144 = vrot.slane %v1143, 1
    %v1145 = vmax.f32 %v1143, %v1144
    %v1146 = vsub.f32 %v1025, %v1145
    %v1147 = vsub.f32 %v1027, %v1145
    %v1148 = vsub.f32 %v1029, %v1145
    %v1149 = vsub.f32 %v1031, %v1145
    %v1150 = vsub.f32 %v1033, %v1145
    %v1151 = vsub.f32 %v1035, %v1145
    %v1152 = vsub.f32 %v1037, %v1145
    %v1153 = vsub.f32 %v1039, %v1145
    %v1154 = vsub.f32 %v1041, %v1145
    %v1155 = vsub.f32 %v1043, %v1145
    %v1156 = vsub.f32 %v1045, %v1145
    %v1157 = vsub.f32 %v1047, %v1145
    %v1158 = vsub.f32 %v1049, %v1145
    %v1159 = vsub.f32 %v1051, %v1145
    %v1160 = vsub.f32 %v1053, %v1145
    %v1161 = vsub.f32 %v1055, %v1145
    %v1162 = vsub.f32 %v1057, %v1145
    %v1163 = vsub.f32 %v1059, %v1145
    %v1164 = vsub.f32 %v1061, %v1145
    %v1165 = vsub.f32 %v1063, %v1145
    %v1166 = vsub.f32 %v1065, %v1145
    %v1167 = vsub.f32 %v1067, %v1145
    %v1168 = vsub.f32 %v1069, %v1145
    %v1169 = vsub.f32 %v1071, %v1145
    %v1170 = vsub.f32 %v1073, %v1145
    %v1171 = vsub.f32 %v1075, %v1145
    %v1172 = vsub.f32 %v1077, %v1145
    %v1173 = vsub.f32 %v1079, %v1145
    %v1174 = vsub.f32 %v1081, %v1145
    %v1175 = vsub.f32 %v1083, %v1145
    %v1176 = vsub.f32 %v1085, %v1145
    %v1177 = vsub.f32 %v1087, %v1145
    %v1178 = vsub.f32 %v1089, %v1145
    %v1179 = vsub.f32 %v1091, %v1145
    %v1180 = vsub.f32 %v1093, %v1145
    %v1181 = vsub.f32 %v1095, %v1145
    %v1182 = vsub.f32 %v1097, %v1145
    %v1183 = vsub.f32 %v1101, %v1145
    %v1184 = vmul.f32 %v1146, 1.442695
    %v1185 = vpow.pop %v1184
    %v1186 = vmul.f32 %v1147, 1.442695
    %v1187 = vpow.pop %v1186
    %v1188 = vmul.f32 %v1148, 1.442695
    %v1189 = vpow.pop %v1188
    %v1190 = vmul.f32 %v1149, 1.442695
    %v1191 = vpow.pop %v1190
    %v1192 = vmul.f32 %v1150, 1.442695
    %v1193 = vpow.pop %v1192
    %v1194 = vmul.f32 %v1151, 1.442695
    %v1195 = vpow.pop %v1194
    %v1196 = vmul.f32 %v1152, 1.442695
    %v1197 = vpow.pop %v1196
    %v1198 = vmul.f32 %v1153, 1.442695
    %v1199 = vpow.pop %v1198
    %v1200 = vmul.f32 %v1154, 1.442695
    %v1201 = vpow.pop %v1200
    %v1202 = vmul.f32 %v1155, 1.442695
    %v1203 = vpow.pop %v1202
    %v1204 = vmul.f32 %v1156, 1.442695
    %v1205 = vpow.pop %v1204
    %v1206 = vmul.f32 %v1157, 1.442695
    %v1207 = vpow.pop %v1206
    %v1208 = vmul.f32 %v1158, 1.442695
    %v1209 = vpow.pop %v1208
    %v1210 = vmul.f32 %v1159, 1.442695
    %v1211 = vpow.pop %v1210
    %v1212 = vmul.f32 %v1160, 1.442695
    %v1213 = vpow.pop %v1212
    %v1214 = vmul.f32 %v1161, 1.442695
    %v1215 = vpow.pop %v1214
    %v1216 = vmul.f32 %v1162, 1.442695
    %v1217 = vpow.pop %v1216
    %v1218 = vmul.f32 %v1163, 1.442695
    %v1219 = vpow.pop %v1218
    %v1220 = vmul.f32 %v1164, 1.442695
    %v1221 = vpow.pop %v1220
    %v1222 = vmul.f32 %v1165, 1.442695
    %v1223 = vpow.pop %v1222
    %v1224 = vmul.f32 %v1166, 1.442695
    %v1225 = vpow.pop %v1224
    %v1226 = vmul.f32 %v1167, 1.442695
    %v1227 = vpow.pop %v1226
    %v1228 = vmul.f32 %v1168, 1.442695
    %v1229 = vpow.pop %v1228
    %v1230 = vmul.f32 %v1169, 1.442695
    %v1231 = vpow.pop %v1230
    %v1232 = vmul.f32 %v1170, 1.442695
    %v1233 = vpow.pop %v1232
    %v1234 = vmul.f32 %v1171, 1.442695
    %v1235 = vpow.pop %v1234
    %v1236 = vmul.f32 %v1172, 1.442695
    %v1237 = vpow.pop %v1236
    %v1238 = vmul.f32 %v1173, 1.442695
    %v1239 = vpow.pop %v1238
    %v1240 = vmul.f32 %v1174, 1.442695
    %v1241 = vpow.pop %v1240
    %v1242 = vmul.f32 %v1175, 1.442695
    %v1243 = vpow.pop %v1242
    %v1244 = vmul.f32 %v1176, 1.442695
    %v1245 = vpow.pop %v1244
    %v1246 = vmul.f32 %v1177, 1.442695
    %v1247 = vpow.pop %v1246
    %v1248 = vmul.f32 %v1178, 1.442695
    %v1249 = vpow.pop %v1248
    %v1250 = vmul.f32 %v1179, 1.442695
    %v1251 = vpow.pop %v1250
    %v1252 = vmul.f32 %v1180, 1.442695
    %v1253 = vpow.pop %v1252
    %v1254 = vmul.f32 %v1181, 1.442695
    %v1255 = vpow.pop %v1254
    %v1256 = vmul.f32 %v1182, 1.442695
    %v1257 = vpow.pop %v1256
    %v1258 = vmul.f32 %v1183, 1.442695
    %v1259 = vpow.pop %v1258
    %v1260 = vadd.f32 %v1185, %v1187
    %v1261 = vadd.f32 %v1260, %v1189
    %v1262 = vadd.f32 %v1261, %v1191
    %v1263 = vadd.f32 %v1262, %v1193
    %v1264 = vadd.f32 %v1263, %v1195
    %v1265 = vadd.f32 %v1264, %v1197
    %v1266 = vadd.f32 %v1265, %v1199
    %v1267 = vadd.f32 %v1266, %v1201
    %v1268 = vadd.f32 %v1267, %v1203
    %v1269 = vadd.f32 %v1268, %v1205
    %v1270 = vadd.f32 %v1269, %v1207
    %v1271 = vadd.f32 %v1270, %v1209
    %v1272 = vadd.f32 %v1271, %v1211
    %v1273 = vadd.f32 %v1272, %v1213
    %v1274 = vadd.f32 %v1273, %v1215
    %v1275 = vadd.f32 %v1274, %v1217
    %v1276 = vadd.f32 %v1275, %v1219
    %v1277 = vadd.f32 %v1276, %v1221
    %v1278 = vadd.f32 %v1277, %v1223
    %v1279 = vadd.f32 %v1278, %v1225
    %v1280 = vadd.f32 %v1279, %v1227
    %v1281 = vadd.f32 %v1280, %v1229
    %v1282 = vadd.f32 %v1281, %v1231
    %v1283 = vadd.f32 %v1282, %v1233
    %v1284 = vadd.f32 %v1283, %v1235
    %v1285 = vadd.f32 %v1284, %v1237
    %v1286 = vadd.f32 %v1285, %v1239
    %v1287 = vadd.f32 %v1286, %v1241
    %v1288 = vadd.f32 %v1287, %v1243
    %v1289 = vadd.f32 %v1288, %v1245
    %v1290 = vadd.f32 %v1289, %v1247
    %v1291 = vadd.f32 %v1290, %v1249
    %v1292 = vadd.f32 %v1291, %v1251
    %v1293 = vadd.f32 %v1292, %v1253
    %v1294 = vadd.f32 %v1293, %v1255
    %v1295 = vadd.f32 %v1294, %v1257
    %v1296 = vsel %vm1098, %v1259, 0.0
    %v1297 = vadd.f32 %v1295, %v1296
    %v1298 = vrot.slane %v1297, 4
    %v1299 = vadd.f32 %v1297, %v1298
    %v1300 = vrot.slane %v1299, 2
    %v1301 = vadd.f32 %v1299, %v1300
    %v1302 = vrot.slane %v1301, 1
    %v1303 = vadd.f32 %v1301, %v1302
    %v1304 = vrcp.pop %v1303
    %v1305 = vmul.f32 %v1185, %v1304
    %v1306 = vmul.f32 %v1187, %v1304
    %v1307 = vmul.f32 %v1189, %v1304
    %v1308 = vmul.f32 %v1191, %v1304
    %v1309 = vmul.f32 %v1193, %v1304
    %v1310 = vmul.f32 %v1195, %v1304
    %v1311 = vmul.f32 %v1197, %v1304
    %v1312 = vmul.f32 %v1199, %v1304
    %v1313 = vmul.f32 %v1201, %v1304
    %v1314 = vmul.f32 %v1203, %v1304
    %v1315 = vmul.f32 %v1205, %v1304
    %v1316 = vmul.f32 %v1207, %v1304
    %v1317 = vmul.f32 %v1209, %v1304
    %v1318 = vmul.f32 %v1211, %v1304
    %v1319 = vmul.f32 %v1213, %v1304
    %v1320 = vmul.f32 %v1215, %v1304
    %v1321 = vmul.f32 %v1217, %v1304
    %v1322 = vmul.f32 %v1219, %v1304
    %v1323 = vmul.f32 %v1221, %v1304
    %v1324 = vmul.f32 %v1223, %v1304
    %v1325 = vmul.f32 %v1225, %v1304
    %v1326 = vmul.f32 %v1227, %v1304
    %v1327 = vmul.f32 %v1229, %v1304
    %v1328 = vmul.f32 %v1231, %v1304
    %v1329 = vmul.f32 %v1233, %v1304
    %v1330 = vmul.f32 %v1235, %v1304
    %v1331 = vmul.f32 %v1237, %v1304
    %v1332 = vmul.f32 %v1239, %v1304
    %v1333 = vmul.f32 %v1241, %v1304
    %v1334 = vmul.f32 %v1243, %v1304
    %v1335 = vmul.f32 %v1245, %v1304
    %v1336 = vmul.f32 %v1247, %v1304
    %v1337 = vmul.f32 %v1249, %v1304
    %v1338 = vmul.f32 %v1251, %v1304
    %v1339 = vmul.f32 %v1253, %v1304
    %v1340 = vmul.f32 %v1255, %v1304
    %v1341 = vmul.f32 %v1257, %v1304
    %v1342 = vmul.f32 %v1259, %v1304
    %v1343 = vld [vmem:[#allocation2] sm:$0x1]
    %v1345 = vlaneseq
    %v1346 = vshrl.u32 %v1345, 7
    %v1347 = vsub.s32 0, %v1346
    %v1348 = vrot.slane %v1343, %v1347
    %v1350 = vmul.f32 %v1305, %v1348
    %v1351 = vmul.f32 %v1306, %v1348
    %v1352 = vmul.f32 %v1307, %v1348
    %v1353 = vmul.f32 %v1308, %v1348
    %v1354 = vmul.f32 %v1309, %v1348
    %v1355 = vmul.f32 %v1310, %v1348
    %v1356 = vmul.f32 %v1311, %v1348
    %v1357 = vmul.f32 %v1312, %v1348
    %v1358 = vmul.f32 %v1313, %v1348
    %v1359 = vmul.f32 %v1314, %v1348
    %v1360 = vmul.f32 %v1315, %v1348
    %v1361 = vmul.f32 %v1316, %v1348
    %v1362 = vmul.f32 %v1317, %v1348
    %v1363 = vmul.f32 %v1318, %v1348
    %v1364 = vmul.f32 %v1319, %v1348
    %v1365 = vmul.f32 %v1320, %v1348
    %v1366 = vmul.f32 %v1321, %v1348
    %v1367 = vmul.f32 %v1322, %v1348
    %v1368 = vmul.f32 %v1323, %v1348
    %v1369 = vmul.f32 %v1324, %v1348
    %v1370 = vmul.f32 %v1325, %v1348
    %v1371 = vmul.f32 %v1326, %v1348
    %v1372 = vmul.f32 %v1327, %v1348
    %v1373 = vmul.f32 %v1328, %v1348
    %v1374 = vmul.f32 %v1329, %v1348
    %v1375 = vmul.f32 %v1330, %v1348
    %v1376 = vmul.f32 %v1331, %v1348
    %v1377 = vmul.f32 %v1332, %v1348
    %v1378 = vmul.f32 %v1333, %v1348
    %v1379 = vmul.f32 %v1334, %v1348
    %v1380 = vmul.f32 %v1335, %v1348
    %v1381 = vmul.f32 %v1336, %v1348
    %v1382 = vmul.f32 %v1337, %v1348
    %v1383 = vmul.f32 %v1338, %v1348
    %v1384 = vmul.f32 %v1339, %v1348
    %v1385 = vmul.f32 %v1340, %v1348
    %v1386 = vmul.f32 %v1341, %v1348
    %v1387 = vmul.f32 %v1342, %v1348
    %v1388 = vadd.f32 %v1350, 0.0
    %v1389 = vadd.f32 %v1351, 0.0
    %v1390 = vadd.f32 %v1352, 0.0
    %v1391 = vadd.f32 %v1353, 0.0
    %v1392 = vadd.f32 %v1354, 0.0
    %v1393 = vadd.f32 %v1355, 0.0
    %v1394 = vadd.f32 %v1356, 0.0
    %v1395 = vadd.f32 %v1357, 0.0
    %v1396 = vadd.f32 %v1358, 0.0
    %v1397 = vadd.f32 %v1359, 0.0
    %v1398 = vadd.f32 %v1360, 0.0
    %v1399 = vadd.f32 %v1361, 0.0
    %v1400 = vadd.f32 %v1362, 0.0
    %v1401 = vadd.f32 %v1363, 0.0
    %v1402 = vadd.f32 %v1364, 0.0
    %v1403 = vadd.f32 %v1365, 0.0
    %v1404 = vadd.f32 %v1366, 0.0
    %v1405 = vadd.f32 %v1367, 0.0
    %v1406 = vadd.f32 %v1368, 0.0
    %v1407 = vadd.f32 %v1369, 0.0
    %v1408 = vadd.f32 %v1370, 0.0
    %v1409 = vadd.f32 %v1371, 0.0
    %v1410 = vadd.f32 %v1372, 0.0
    %v1411 = vadd.f32 %v1373, 0.0
    %v1412 = vadd.f32 %v1374, 0.0
    %v1413 = vadd.f32 %v1375, 0.0
    %v1414 = vadd.f32 %v1376, 0.0
    %v1415 = vadd.f32 %v1377, 0.0
    %v1416 = vadd.f32 %v1378, 0.0
    %v1417 = vadd.f32 %v1379, 0.0
    %v1418 = vadd.f32 %v1380, 0.0
    %v1419 = vadd.f32 %v1381, 0.0
    %v1420 = vadd.f32 %v1382, 0.0
    %v1421 = vadd.f32 %v1383, 0.0
    %v1422 = vadd.f32 %v1384, 0.0
    %v1423 = vadd.f32 %v1385, 0.0
    %v1424 = vadd.f32 %v1386, 0.0
    %v1425 = vadd.f32 %v1387, 0.0
    %vm1426 = vcmask 7168
    %v1427 = vsel %vm1426, %v1388, -inf
    %v1428 = vsel %vm1426, %v1389, -inf
    %v1429 = vsel %vm1426, %v1390, -inf
    %v1430 = vsel %vm1426, %v1391, -inf
    %v1431 = vsel %vm1426, %v1392, -inf
    %v1432 = vmax.f32 %v1427, %v1431
    %v1433 = vsel %vm1426, %v1393, -inf
    %v1434 = vmax.f32 %v1428, %v1433
    %v1435 = vsel %vm1426, %v1394, -inf
    %v1436 = vmax.f32 %v1429, %v1435
    %v1437 = vsel %vm1426, %v1395, -inf
    %v1438 = vmax.f32 %v1430, %v1437
    %v1439 = vsel %vm1426, %v1396, -inf
    %v1440 = vmax.f32 %v1432, %v1439
    %v1441 = vsel %vm1426, %v1397, -inf
    %v1442 = vmax.f32 %v1434, %v1441
    %v1443 = vsel %vm1426, %v1398, -inf
    %v1444 = vmax.f32 %v1436, %v1443
    %v1445 = vsel %vm1426, %v1399, -inf
    %v1446 = vmax.f32 %v1438, %v1445
    %v1447 = vsel %vm1426, %v1400, -inf
    %v1448 = vmax.f32 %v1440, %v1447
    %v1449 = vsel %vm1426, %v1401, -inf
    %v1450 = vmax.f32 %v1442, %v1449
    %v1451 = vsel %vm1426, %v1402, -inf
    %v1452 = vmax.f32 %v1444, %v1451
    %v1453 = vsel %vm1426, %v1403, -inf
    %v1454 = vmax.f32 %v1446, %v1453
    %v1455 = vsel %vm1426, %v1404, -inf
    %v1456 = vmax.f32 %v1448, %v1455
    %v1457 = vsel %vm1426, %v1405, -inf
    %v1458 = vmax.f32 %v1450, %v1457
    %v1459 = vsel %vm1426, %v1406, -inf
    %v1460 = vmax.f32 %v1452, %v1459
    %v1461 = vsel %vm1426, %v1407, -inf
    %v1462 = vmax.f32 %v1454, %v1461
    %v1463 = vsel %vm1426, %v1408, -inf
    %v1464 = vmax.f32 %v1456, %v1463
    %v1465 = vsel %vm1426, %v1409, -inf
    %v1466 = vmax.f32 %v1458, %v1465
    %v1467 = vsel %vm1426, %v1410, -inf
    %v1468 = vmax.f32 %v1460, %v1467
    %v1469 = vsel %vm1426, %v1411, -inf
    %v1470 = vmax.f32 %v1462, %v1469
    %v1471 = vsel %vm1426, %v1412, -inf
    %v1472 = vmax.f32 %v1464, %v1471
    %v1473 = vsel %vm1426, %v1413, -inf
    %v1474 = vmax.f32 %v1466, %v1473
    %v1475 = vsel %vm1426, %v1414, -inf
    %v1476 = vmax.f32 %v1468, %v1475
    %v1477 = vsel %vm1426, %v1415, -inf
    %v1478 = vmax.f32 %v1470, %v1477
    %v1479 = vsel %vm1426, %v1416, -inf
    %v1480 = vmax.f32 %v1472, %v1479
    %v1481 = vsel %vm1426, %v1417, -inf
    %v1482 = vmax.f32 %v1474, %v1481
    %v1483 = vsel %vm1426, %v1418, -inf
    %v1484 = vmax.f32 %v1476, %v1483
    %v1485 = vsel %vm1426, %v1419, -inf
    %v1486 = vmax.f32 %v1478, %v1485
    %v1487 = vsel %vm1426, %v1420, -inf
    %v1488 = vmax.f32 %v1480, %v1487
    %v1489 = vsel %vm1426, %v1421, -inf
    %v1490 = vmax.f32 %v1482, %v1489
    %v1491 = vsel %vm1426, %v1422, -inf
    %v1492 = vmax.f32 %v1484, %v1491
    %v1493 = vsel %vm1426, %v1423, -inf
    %v1494 = vmax.f32 %v1486, %v1493
    %v1495 = vsel %vm1426, %v1424, -inf
    %v1496 = vmax.f32 %v1488, %v1495
    %vm1497 = vcmask 3072
    %v1498 = vsel %vm1497, %v1425, -inf
    %v1499 = vmax.f32 %v1490, %v1498
    %v1500 = vmax.f32 %v1496, %v1499
    %v1501 = vmax.f32 %v1492, %v1494
    %v1502 = vmax.f32 %v1500, %v1501
    %v1503 = vrot.slane %v1502, 4
    %v1504 = vmax.f32 %v1502, %v1503
    %v1505 = vrot.slane %v1504, 2
    %v1506 = vmax.f32 %v1504, %v1505
    %v1507 = vrot.slane %v1506, 1
    %v1508 = vmax.f32 %v1506, %v1507
    %v1509 = vsub.f32 %v1388, %v1508
    %v1510 = vsub.f32 %v1389, %v1508
    %v1511 = vsub.f32 %v1390, %v1508
    %v1512 = vsub.f32 %v1391, %v1508
    %v1513 = vsub.f32 %v1392, %v1508
    %v1514 = vsub.f32 %v1393, %v1508
    %v1515 = vsub.f32 %v1394, %v1508
    %v1516 = vsub.f32 %v1395, %v1508
    %v1517 = vsub.f32 %v1396, %v1508
    %v1518 = vsub.f32 %v1397, %v1508
    %v1519 = vsub.f32 %v1398, %v1508
    %v1520 = vsub.f32 %v1399, %v1508
    %v1521 = vsub.f32 %v1400, %v1508
    %v1522 = vsub.f32 %v1401, %v1508
    %v1523 = vsub.f32 %v1402, %v1508
    %v1524 = vsub.f32 %v1403, %v1508
    %v1525 = vsub.f32 %v1404, %v1508
    %v1526 = vsub.f32 %v1405, %v1508
    %v1527 = vsub.f32 %v1406, %v1508
    %v1528 = vsub.f32 %v1407, %v1508
    %v1529 = vsub.f32 %v1408, %v1508
    %v1530 = vsub.f32 %v1409, %v1508
    %v1531 = vsub.f32 %v1410, %v1508
    %v1532 = vsub.f32 %v1411, %v1508
    %v1533 = vsub.f32 %v1412, %v1508
    %v1534 = vsub.f32 %v1413, %v1508
    %v1535 = vsub.f32 %v1414, %v1508
    %v1536 = vsub.f32 %v1415, %v1508
    %v1537 = vsub.f32 %v1416, %v1508
    %v1538 = vsub.f32 %v1417, %v1508
    %v1539 = vsub.f32 %v1418, %v1508
    %v1540 = vsub.f32 %v1419, %v1508
    %v1541 = vsub.f32 %v1420, %v1508
    %v1542 = vsub.f32 %v1421, %v1508
    %v1543 = vsub.f32 %v1422, %v1508
    %v1544 = vsub.f32 %v1423, %v1508
    %v1545 = vsub.f32 %v1424, %v1508
    %v1546 = vsub.f32 %v1425, %v1508
    %v1547 = vmul.f32 %v1509, 1.442695
    %v1548 = vpow.pop %v1547
    %v1549 = vmul.f32 %v1510, 1.442695
    %v1550 = vpow.pop %v1549
    %v1551 = vmul.f32 %v1511, 1.442695
    %v1552 = vpow.pop %v1551
    %v1553 = vmul.f32 %v1512, 1.442695
    %v1554 = vpow.pop %v1553
    %v1555 = vmul.f32 %v1513, 1.442695
    %v1556 = vpow.pop %v1555
    %v1557 = vmul.f32 %v1514, 1.442695
    %v1558 = vpow.pop %v1557
    %v1559 = vmul.f32 %v1515, 1.442695
    %v1560 = vpow.pop %v1559
    %v1561 = vmul.f32 %v1516, 1.442695
    %v1562 = vpow.pop %v1561
    %v1563 = vmul.f32 %v1517, 1.442695
    %v1564 = vpow.pop %v1563
    %v1565 = vmul.f32 %v1518, 1.442695
    %v1566 = vpow.pop %v1565
    %v1567 = vmul.f32 %v1519, 1.442695
    %v1568 = vpow.pop %v1567
    %v1569 = vmul.f32 %v1520, 1.442695
    %v1570 = vpow.pop %v1569
    %v1571 = vmul.f32 %v1521, 1.442695
    %v1572 = vpow.pop %v1571
    %v1573 = vmul.f32 %v1522, 1.442695
    %v1574 = vpow.pop %v1573
    %v1575 = vmul.f32 %v1523, 1.442695
    %v1576 = vpow.pop %v1575
    %v1577 = vmul.f32 %v1524, 1.442695
    %v1578 = vpow.pop %v1577
    %v1579 = vmul.f32 %v1525, 1.442695
    %v1580 = vpow.pop %v1579
    %v1581 = vmul.f32 %v1526, 1.442695
    %v1582 = vpow.pop %v1581
    %v1583 = vmul.f32 %v1527, 1.442695
    %v1584 = vpow.pop %v1583
    %v1585 = vmul.f32 %v1528, 1.442695
    %v1586 = vpow.pop %v1585
    %v1587 = vmul.f32 %v1529, 1.442695
    %v1588 = vpow.pop %v1587
    %v1589 = vmul.f32 %v1530, 1.442695
    %v1590 = vpow.pop %v1589
    %v1591 = vmul.f32 %v1531, 1.442695
    %v1592 = vpow.pop %v1591
    %v1593 = vmul.f32 %v1532, 1.442695
    %v1594 = vpow.pop %v1593
    %v1595 = vmul.f32 %v1533, 1.442695
    %v1596 = vpow.pop %v1595
    %v1597 = vmul.f32 %v1534, 1.442695
    %v1598 = vpow.pop %v1597
    %v1599 = vmul.f32 %v1535, 1.442695
    %v1600 = vpow.pop %v1599
    %v1601 = vmul.f32 %v1536, 1.442695
    %v1602 = vpow.pop %v1601
    %v1603 = vmul.f32 %v1537, 1.442695
    %v1604 = vpow.pop %v1603
    %v1605 = vmul.f32 %v1538, 1.442695
    %v1606 = vpow.pop %v1605
    %v1607 = vmul.f32 %v1539, 1.442695
    %v1608 = vpow.pop %v1607
    %v1609 = vmul.f32 %v1540, 1.442695
    %v1610 = vpow.pop %v1609
    %v1611 = vmul.f32 %v1541, 1.442695
    %v1612 = vpow.pop %v1611
    %v1613 = vmul.f32 %v1542, 1.442695
    %v1614 = vpow.pop %v1613
    %v1615 = vmul.f32 %v1543, 1.442695
    %v1616 = vpow.pop %v1615
    %v1617 = vmul.f32 %v1544, 1.442695
    %v1618 = vpow.pop %v1617
    %v1619 = vmul.f32 %v1545, 1.442695
    %v1620 = vpow.pop %v1619
    %v1621 = vmul.f32 %v1546, 1.442695
    %v1622 = vpow.pop %v1621
    %v1623 = vsel %vm1426, %v1548, 0.0
    %v1624 = vsel %vm1426, %v1550, 0.0
    %v1625 = vadd.f32 %v1623, %v1624
    %v1626 = vsel %vm1426, %v1552, 0.0
    %v1627 = vadd.f32 %v1625, %v1626
    %v1628 = vsel %vm1426, %v1554, 0.0
    %v1629 = vadd.f32 %v1627, %v1628
    %v1630 = vsel %vm1426, %v1556, 0.0
    %v1631 = vadd.f32 %v1629, %v1630
    %v1632 = vsel %vm1426, %v1558, 0.0
    %v1633 = vadd.f32 %v1631, %v1632
    %v1634 = vsel %vm1426, %v1560, 0.0
    %v1635 = vadd.f32 %v1633, %v1634
    %v1636 = vsel %vm1426, %v1562, 0.0
    %v1637 = vadd.f32 %v1635, %v1636
    %v1638 = vsel %vm1426, %v1564, 0.0
    %v1639 = vadd.f32 %v1637, %v1638
    %v1640 = vsel %vm1426, %v1566, 0.0
    %v1641 = vadd.f32 %v1639, %v1640
    %v1642 = vsel %vm1426, %v1568, 0.0
    %v1643 = vadd.f32 %v1641, %v1642
    %v1644 = vsel %vm1426, %v1570, 0.0
    %v1645 = vadd.f32 %v1643, %v1644
    %v1646 = vsel %vm1426, %v1572, 0.0
    %v1647 = vadd.f32 %v1645, %v1646
    %v1648 = vsel %vm1426, %v1574, 0.0
    %v1649 = vadd.f32 %v1647, %v1648
    %v1650 = vsel %vm1426, %v1576, 0.0
    %v1651 = vadd.f32 %v1649, %v1650
    %v1652 = vsel %vm1426, %v1578, 0.0
    %v1653 = vadd.f32 %v1651, %v1652
    %v1654 = vsel %vm1426, %v1580, 0.0
    %v1655 = vadd.f32 %v1653, %v1654
    %v1656 = vsel %vm1426, %v1582, 0.0
    %v1657 = vadd.f32 %v1655, %v1656
    %v1658 = vsel %vm1426, %v1584, 0.0
    %v1659 = vadd.f32 %v1657, %v1658
    %v1660 = vsel %vm1426, %v1586, 0.0
    %v1661 = vadd.f32 %v1659, %v1660
    %v1662 = vsel %vm1426, %v1588, 0.0
    %v1663 = vadd.f32 %v1661, %v1662
    %v1664 = vsel %vm1426, %v1590, 0.0
    %v1665 = vadd.f32 %v1663, %v1664
    %v1666 = vsel %vm1426, %v1592, 0.0
    %v1667 = vadd.f32 %v1665, %v1666
    %v1668 = vsel %vm1426, %v1594, 0.0
    %v1669 = vadd.f32 %v1667, %v1668
    %v1670 = vsel %vm1426, %v1596, 0.0
    %v1671 = vadd.f32 %v1669, %v1670
    %v1672 = vsel %vm1426, %v1598, 0.0
    %v1673 = vadd.f32 %v1671, %v1672
    %v1674 = vsel %vm1426, %v1600, 0.0
    %v1675 = vadd.f32 %v1673, %v1674
    %v1676 = vsel %vm1426, %v1602, 0.0
    %v1677 = vadd.f32 %v1675, %v1676
    %v1678 = vsel %vm1426, %v1604, 0.0
    %v1679 = vadd.f32 %v1677, %v1678
    %v1680 = vsel %vm1426, %v1606, 0.0
    %v1681 = vadd.f32 %v1679, %v1680
    %v1682 = vsel %vm1426, %v1608, 0.0
    %v1683 = vadd.f32 %v1681, %v1682
    %v1684 = vsel %vm1426, %v1610, 0.0
    %v1685 = vadd.f32 %v1683, %v1684
    %v1686 = vsel %vm1426, %v1612, 0.0
    %v1687 = vadd.f32 %v1685, %v1686
    %v1688 = vsel %vm1426, %v1614, 0.0
    %v1689 = vadd.f32 %v1687, %v1688
    %v1690 = vsel %vm1426, %v1616, 0.0
    %v1691 = vadd.f32 %v1689, %v1690
    %v1692 = vsel %vm1426, %v1618, 0.0
    %v1693 = vadd.f32 %v1691, %v1692
    %v1694 = vsel %vm1426, %v1620, 0.0
    %v1695 = vadd.f32 %v1693, %v1694
    %v1696 = vsel %vm1497, %v1622, 0.0
    %v1697 = vadd.f32 %v1695, %v1696
    %v1698 = vrot.slane %v1697, 4
    %v1699 = vadd.f32 %v1697, %v1698
    %v1700 = vrot.slane %v1699, 2
    %v1701 = vadd.f32 %v1699, %v1700
    %v1702 = vrot.slane %v1701, 1
    %v1703 = vadd.f32 %v1701, %v1702
    %v1704 = vrcp.pop %v1703
    %v1705 = vmul.f32 %v1548, %v1704
    %v1706 = vmul.f32 %v1550, %v1704
    %v1707 = vmul.f32 %v1552, %v1704
    %v1708 = vmul.f32 %v1554, %v1704
    %v1709 = vmul.f32 %v1556, %v1704
    %v1710 = vmul.f32 %v1558, %v1704
    %v1711 = vmul.f32 %v1560, %v1704
    %v1712 = vmul.f32 %v1562, %v1704
    %v1713 = vmul.f32 %v1564, %v1704
    %v1714 = vmul.f32 %v1566, %v1704
    %v1715 = vmul.f32 %v1568, %v1704
    %v1716 = vmul.f32 %v1570, %v1704
    %v1717 = vmul.f32 %v1572, %v1704
    %v1718 = vmul.f32 %v1574, %v1704
    %v1719 = vmul.f32 %v1576, %v1704
    %v1720 = vmul.f32 %v1578, %v1704
    %v1721 = vmul.f32 %v1580, %v1704
    %v1722 = vmul.f32 %v1582, %v1704
    %v1723 = vmul.f32 %v1584, %v1704
    %v1724 = vmul.f32 %v1586, %v1704
    %v1725 = vmul.f32 %v1588, %v1704
    %v1726 = vmul.f32 %v1590, %v1704
    %v1727 = vmul.f32 %v1592, %v1704
    %v1728 = vmul.f32 %v1594, %v1704
    %v1729 = vmul.f32 %v1596, %v1704
    %v1730 = vmul.f32 %v1598, %v1704
    %v1731 = vmul.f32 %v1600, %v1704
    %v1732 = vmul.f32 %v1602, %v1704
    %v1733 = vmul.f32 %v1604, %v1704
    %v1734 = vmul.f32 %v1606, %v1704
    %v1735 = vmul.f32 %v1608, %v1704
    %v1736 = vmul.f32 %v1610, %v1704
    %v1737 = vmul.f32 %v1612, %v1704
    %v1738 = vmul.f32 %v1614, %v1704
    %v1739 = vmul.f32 %v1616, %v1704
    %v1740 = vmul.f32 %v1618, %v1704
    %v1741 = vmul.f32 %v1620, %v1704
    %v1742 = vmul.f32 %v1622, %v1704
    %1743 = vst.msk [vmem:[%s6] sm:$0xff] %vm1426, %v1705
    %1744 = vst.msk [vmem:[%s6 + $0x8] sm:$0xff] %vm1426, %v1706
    %1745 = vst.msk [vmem:[%s6 + $0x10] sm:$0xff] %vm1426, %v1707
    %1746 = vst.msk [vmem:[%s6 + $0x18] sm:$0xff] %vm1426, %v1708
    %1747 = vst.msk [vmem:[%s6 + $0x20] sm:$0xff] %vm1426, %v1709
    %1748 = vst.msk [vmem:[%s6 + $0x28] sm:$0xff] %vm1426, %v1710
    %1749 = vst.msk [vmem:[%s6 + $0x30] sm:$0xff] %vm1426, %v1711
    %1750 = vst.msk [vmem:[%s6 + $0x38] sm:$0xff] %vm1426, %v1712
    %1751 = vst.msk [vmem:[%s6 + $0x40] sm:$0xff] %vm1426, %v1713
    %1752 = vst.msk [vmem:[%s6 + $0x48] sm:$0xff] %vm1426, %v1714
    %1753 = vst.msk [vmem:[%s6 + $0x50] sm:$0xff] %vm1426, %v1715
    %1754 = vst.msk [vmem:[%s6 + $0x58] sm:$0xff] %vm1426, %v1716
    %1755 = vst.msk [vmem:[%s6 + $0x60] sm:$0xff] %vm1426, %v1717
    %1756 = vst.msk [vmem:[%s6 + $0x68] sm:$0xff] %vm1426, %v1718
    %1757 = vst.msk [vmem:[%s6 + $0x70] sm:$0xff] %vm1426, %v1719
    %1758 = vst.msk [vmem:[%s6 + $0x78] sm:$0xff] %vm1426, %v1720
    %1759 = vst.msk [vmem:[%s6 + $0x80] sm:$0xff] %vm1426, %v1721
    %1760 = vst.msk [vmem:[%s6 + $0x88] sm:$0xff] %vm1426, %v1722
    %1761 = vst.msk [vmem:[%s6 + $0x90] sm:$0xff] %vm1426, %v1723
    %1762 = vst.msk [vmem:[%s6 + $0x98] sm:$0xff] %vm1426, %v1724
    %1763 = vst.msk [vmem:[%s6 + $0xa0] sm:$0xff] %vm1426, %v1725
    %1764 = vst.msk [vmem:[%s6 + $0xa8] sm:$0xff] %vm1426, %v1726
    %1765 = vst.msk [vmem:[%s6 + $0xb0] sm:$0xff] %vm1426, %v1727
    %1766 = vst.msk [vmem:[%s6 + $0xb8] sm:$0xff] %vm1426, %v1728
    %1767 = vst.msk [vmem:[%s6 + $0xc0] sm:$0xff] %vm1426, %v1729
    %1768 = vst.msk [vmem:[%s6 + $0xc8] sm:$0xff] %vm1426, %v1730
    %1769 = vst.msk [vmem:[%s6 + $0xd0] sm:$0xff] %vm1426, %v1731
    %1770 = vst.msk [vmem:[%s6 + $0xd8] sm:$0xff] %vm1426, %v1732
    %1771 = vst.msk [vmem:[%s6 + $0xe0] sm:$0xff] %vm1426, %v1733
    %1772 = vst.msk [vmem:[%s6 + $0xe8] sm:$0xff] %vm1426, %v1734
    %1773 = vst.msk [vmem:[%s6 + $0xf0] sm:$0xff] %vm1426, %v1735
    %1774 = vst.msk [vmem:[%s6 + $0xf8] sm:$0xff] %vm1426, %v1736
    %1775 = vst.msk [vmem:[%s6 + $0x100] sm:$0xff] %vm1426, %v1737
    %1776 = vst.msk [vmem:[%s6 + $0x108] sm:$0xff] %vm1426, %v1738
    %1777 = vst.msk [vmem:[%s6 + $0x110] sm:$0xff] %vm1426, %v1739
    %1778 = vst.msk [vmem:[%s6 + $0x118] sm:$0xff] %vm1426, %v1740
    %1779 = vst.msk [vmem:[%s6 + $0x120] sm:$0xff] %vm1426, %v1741
    %1780 = vst.msk [vmem:[%s6 + $0x128] sm:$0xf] %vm1497, %v1742
    %1782 = vset.pattern.permute.xlu0 0
    %1783 = vperm.xlu0 %1782, %v1705
    %v1784 = vpop.permute.xlu0 %1783
    %1787 = vset.pattern.permute.xlu0 0
    %1788 = vperm.xlu0 %1787, %v1706
    %v1789 = vpop.permute.xlu0 %1788
    %1792 = vset.pattern.permute.xlu0 0
    %1793 = vperm.xlu0 %1792, %v1707
    %v1794 = vpop.permute.xlu0 %1793
    %1797 = vset.pattern.permute.xlu0 0
    %1798 = vperm.xlu0 %1797, %v1708
    %v1799 = vpop.permute.xlu0 %1798
    %1802 = vset.pattern.permute.xlu0 0
    %1803 = vperm.xlu0 %1802, %v1709
    %v1804 = vpop.permute.xlu0 %1803
    %1807 = vset.pattern.permute.xlu0 0
    %1808 = vperm.xlu0 %1807, %v1710
    %v1809 = vpop.permute.xlu0 %1808
    %1812 = vset.pattern.permute.xlu0 0
    %1813 = vperm.xlu0 %1812, %v1711
    %v1814 = vpop.permute.xlu0 %1813
    %1817 = vset.pattern.permute.xlu0 0
    %1818 = vperm.xlu0 %1817, %v1712
    %v1819 = vpop.permute.xlu0 %1818
    %1822 = vset.pattern.permute.xlu0 0
    %1823 = vperm.xlu0 %1822, %v1713
    %v1824 = vpop.permute.xlu0 %1823
    %1827 = vset.pattern.permute.xlu0 0
    %1828 = vperm.xlu0 %1827, %v1714
    %v1829 = vpop.permute.xlu0 %1828
    %1832 = vset.pattern.permute.xlu0 0
    %1833 = vperm.xlu0 %1832, %v1715
    %v1834 = vpop.permute.xlu0 %1833
    %1837 = vset.pattern.permute.xlu0 0
    %1838 = vperm.xlu0 %1837, %v1716
    %v1839 = vpop.permute.xlu0 %1838
    %1842 = vset.pattern.permute.xlu0 0
    %1843 = vperm.xlu0 %1842, %v1717
    %v1844 = vpop.permute.xlu0 %1843
    %1847 = vset.pattern.permute.xlu0 0
    %1848 = vperm.xlu0 %1847, %v1718
    %v1849 = vpop.permute.xlu0 %1848
    %1852 = vset.pattern.permute.xlu0 0
    %1853 = vperm.xlu0 %1852, %v1719
    %v1854 = vpop.permute.xlu0 %1853
    %1857 = vset.pattern.permute.xlu0 0
    %1858 = vperm.xlu0 %1857, %v1720
    %v1859 = vpop.permute.xlu0 %1858
    %1862 = vset.pattern.permute.xlu0 0
    %1863 = vperm.xlu0 %1862, %v1721
    %v1864 = vpop.permute.xlu0 %1863
    %1867 = vset.pattern.permute.xlu0 0
    %1868 = vperm.xlu0 %1867, %v1722
    %v1869 = vpop.permute.xlu0 %1868
    %1872 = vset.pattern.permute.xlu0 0
    %1873 = vperm.xlu0 %1872, %v1723
    %v1874 = vpop.permute.xlu0 %1873
    %1877 = vset.pattern.permute.xlu0 0
    %1878 = vperm.xlu0 %1877, %v1724
    %v1879 = vpop.permute.xlu0 %1878
    %1882 = vset.pattern.permute.xlu0 0
    %1883 = vperm.xlu0 %1882, %v1725
    %v1884 = vpop.permute.xlu0 %1883
    %1887 = vset.pattern.permute.xlu0 0
    %1888 = vperm.xlu0 %1887, %v1726
    %v1889 = vpop.permute.xlu0 %1888
    %1892 = vset.pattern.permute.xlu0 0
    %1893 = vperm.xlu0 %1892, %v1727
    %v1894 = vpop.permute.xlu0 %1893
    %1897 = vset.pattern.permute.xlu0 0
    %1898 = vperm.xlu0 %1897, %v1728
    %v1899 = vpop.permute.xlu0 %1898
    %1902 = vset.pattern.permute.xlu0 0
    %1903 = vperm.xlu0 %1902, %v1729
    %v1904 = vpop.permute.xlu0 %1903
    %1907 = vset.pattern.permute.xlu0 0
    %1908 = vperm.xlu0 %1907, %v1730
    %v1909 = vpop.permute.xlu0 %1908
    %1912 = vset.pattern.permute.xlu0 0
    %1913 = vperm.xlu0 %1912, %v1731
    %v1914 = vpop.permute.xlu0 %1913
    %1917 = vset.pattern.permute.xlu0 0
    %1918 = vperm.xlu0 %1917, %v1732
    %v1919 = vpop.permute.xlu0 %1918
    %1922 = vset.pattern.permute.xlu0 0
    %1923 = vperm.xlu0 %1922, %v1733
    %v1924 = vpop.permute.xlu0 %1923
    %1927 = vset.pattern.permute.xlu0 0
    %1928 = vperm.xlu0 %1927, %v1734
    %v1929 = vpop.permute.xlu0 %1928
    %1932 = vset.pattern.permute.xlu0 0
    %1933 = vperm.xlu0 %1932, %v1735
    %v1934 = vpop.permute.xlu0 %1933
    %1937 = vset.pattern.permute.xlu0 0
    %1938 = vperm.xlu0 %1937, %v1736
    %v1939 = vpop.permute.xlu0 %1938
    %1942 = vset.pattern.permute.xlu0 0
    %1943 = vperm.xlu0 %1942, %v1737
    %v1944 = vpop.permute.xlu0 %1943
    %1947 = vset.pattern.permute.xlu0 0
    %1948 = vperm.xlu0 %1947, %v1738
    %v1949 = vpop.permute.xlu0 %1948
    %1952 = vset.pattern.permute.xlu0 0
    %1953 = vperm.xlu0 %1952, %v1739
    %v1954 = vpop.permute.xlu0 %1953
    %1957 = vset.pattern.permute.xlu0 0
    %1958 = vperm.xlu0 %1957, %v1740
    %v1959 = vpop.permute.xlu0 %1958
    %1962 = vset.pattern.permute.xlu0 0
    %1963 = vperm.xlu0 %1962, %v1741
    %v1964 = vpop.permute.xlu0 %1963
    %1967 = vset.pattern.permute.xlu0 0
    %1968 = vperm.xlu0 %1967, %v1742
    %v1969 = vpop.permute.xlu0 %1968
    %v1971 = vmul.f32 %v1784, %v42
    %v1972 = vmul.f32 %v1784, %v43
    %v1973 = vmul.f32 %v1784, %v44
    %v1974 = vmul.f32 %v1784, %v45
    %v1975 = vmul.f32 %v1789, %v46
    %v1976 = vmul.f32 %v1789, %v47
    %v1977 = vmul.f32 %v1789, %v48
    %v1978 = vmul.f32 %v1789, %v49
    %v1979 = vmul.f32 %v1794, %v50
    %v1980 = vmul.f32 %v1794, %v51
    %v1981 = vmul.f32 %v1794, %v52
    %v1982 = vmul.f32 %v1794, %v53
    %v1983 = vmul.f32 %v1799, %v54
    %v1984 = vmul.f32 %v1799, %v55
    %v1985 = vmul.f32 %v1799, %v56
    %v1986 = vmul.f32 %v1799, %v57
    %v1987 = vmul.f32 %v1804, %v58
    %v1988 = vmul.f32 %v1804, %v59
    %v1989 = vmul.f32 %v1804, %v60
    %v1990 = vmul.f32 %v1804, %v61
    %v1991 = vmul.f32 %v1809, %v62
    %v1992 = vmul.f32 %v1809, %v63
    %v1993 = vmul.f32 %v1809, %v64
    %v1994 = vmul.f32 %v1809, %v65
    %v1995 = vmul.f32 %v1814, %v66
    %v1996 = vmul.f32 %v1814, %v67
    %v1997 = vmul.f32 %v1814, %v68
    %v1998 = vmul.f32 %v1814, %v69
    %v1999 = vmul.f32 %v1819, %v70
    %v2000 = vmul.f32 %v1819, %v71
    %v2001 = vmul.f32 %v1819, %v72
    %v2002 = vmul.f32 %v1819, %v73
    %v2003 = vmul.f32 %v1824, %v74
    %v2004 = vmul.f32 %v1824, %v75
    %v2005 = vmul.f32 %v1824, %v76
    %v2006 = vmul.f32 %v1824, %v77
    %v2007 = vmul.f32 %v1829, %v78
    %v2008 = vmul.f32 %v1829, %v79
    %v2009 = vmul.f32 %v1829, %v80
    %v2010 = vmul.f32 %v1829, %v81
    %v2011 = vmul.f32 %v1834, %v82
    %v2012 = vmul.f32 %v1834, %v83
    %v2013 = vmul.f32 %v1834, %v84
    %v2014 = vmul.f32 %v1834, %v85
    %v2015 = vmul.f32 %v1839, %v86
    %v2016 = vmul.f32 %v1839, %v87
    %v2017 = vmul.f32 %v1839, %v88
    %v2018 = vmul.f32 %v1839, %v89
    %v2019 = vmul.f32 %v1844, %v90
    %v2020 = vmul.f32 %v1844, %v91
    %v2021 = vmul.f32 %v1844, %v92
    %v2022 = vmul.f32 %v1844, %v93
    %v2023 = vmul.f32 %v1849, %v94
    %v2024 = vmul.f32 %v1849, %v95
    %v2025 = vmul.f32 %v1849, %v96
    %v2026 = vmul.f32 %v1849, %v97
    %v2027 = vmul.f32 %v1854, %v98
    %v2028 = vmul.f32 %v1854, %v99
    %v2029 = vmul.f32 %v1854, %v100
    %v2030 = vmul.f32 %v1854, %v101
    %v2031 = vmul.f32 %v1859, %v102
    %v2032 = vmul.f32 %v1859, %v103
    %v2033 = vmul.f32 %v1859, %v104
    %v2034 = vmul.f32 %v1859, %v105
    %v2035 = vmul.f32 %v1864, %v106
    %v2036 = vmul.f32 %v1864, %v107
    %v2037 = vmul.f32 %v1864, %v108
    %v2038 = vmul.f32 %v1864, %v109
    %v2039 = vmul.f32 %v1869, %v110
    %v2040 = vmul.f32 %v1869, %v111
    %v2041 = vmul.f32 %v1869, %v112
    %v2042 = vmul.f32 %v1869, %v113
    %v2043 = vmul.f32 %v1874, %v114
    %v2044 = vmul.f32 %v1874, %v115
    %v2045 = vmul.f32 %v1874, %v116
    %v2046 = vmul.f32 %v1874, %v117
    %v2047 = vmul.f32 %v1879, %v118
    %v2048 = vmul.f32 %v1879, %v119
    %v2049 = vmul.f32 %v1879, %v120
    %v2050 = vmul.f32 %v1879, %v121
    %v2051 = vmul.f32 %v1884, %v122
    %v2052 = vmul.f32 %v1884, %v123
    %v2053 = vmul.f32 %v1884, %v124
    %v2054 = vmul.f32 %v1884, %v125
    %v2055 = vmul.f32 %v1889, %v126
    %v2056 = vmul.f32 %v1889, %v127
    %v2057 = vmul.f32 %v1889, %v128
    %v2058 = vmul.f32 %v1889, %v129
    %v2059 = vmul.f32 %v1894, %v130
    %v2060 = vmul.f32 %v1894, %v131
    %v2061 = vmul.f32 %v1894, %v132
    %v2062 = vmul.f32 %v1894, %v133
    %v2063 = vmul.f32 %v1899, %v134
    %v2064 = vmul.f32 %v1899, %v135
    %v2065 = vmul.f32 %v1899, %v136
    %v2066 = vmul.f32 %v1899, %v137
    %v2067 = vmul.f32 %v1904, %v138
    %v2068 = vmul.f32 %v1904, %v139
    %v2069 = vmul.f32 %v1904, %v140
    %v2070 = vmul.f32 %v1904, %v141
    %v2071 = vmul.f32 %v1909, %v142
    %v2072 = vmul.f32 %v1909, %v143
    %v2073 = vmul.f32 %v1909, %v144
    %v2074 = vmul.f32 %v1909, %v145
    %v2075 = vmul.f32 %v1914, %v146
    %v2076 = vmul.f32 %v1914, %v147
    %v2077 = vmul.f32 %v1914, %v148
    %v2078 = vmul.f32 %v1914, %v149
    %v2079 = vmul.f32 %v1919, %v150
    %v2080 = vmul.f32 %v1919, %v151
    %v2081 = vmul.f32 %v1919, %v152
    %v2082 = vmul.f32 %v1919, %v153
    %v2083 = vmul.f32 %v1924, %v154
    %v2084 = vmul.f32 %v1924, %v155
    %v2085 = vmul.f32 %v1924, %v156
    %v2086 = vmul.f32 %v1924, %v157
    %v2087 = vmul.f32 %v1929, %v158
    %v2088 = vmul.f32 %v1929, %v159
    %v2089 = vmul.f32 %v1929, %v160
    %v2090 = vmul.f32 %v1929, %v161
    %v2091 = vmul.f32 %v1934, %v162
    %v2092 = vmul.f32 %v1934, %v163
    %v2093 = vmul.f32 %v1934, %v164
    %v2094 = vmul.f32 %v1934, %v165
    %v2095 = vmul.f32 %v1939, %v166
    %v2096 = vmul.f32 %v1939, %v167
    %v2097 = vmul.f32 %v1939, %v168
    %v2098 = vmul.f32 %v1939, %v169
    %v2099 = vmul.f32 %v1944, %v170
    %v2100 = vmul.f32 %v1944, %v171
    %v2101 = vmul.f32 %v1944, %v172
    %v2102 = vmul.f32 %v1944, %v173
    %v2103 = vmul.f32 %v1949, %v174
    %v2104 = vmul.f32 %v1949, %v175
    %v2105 = vmul.f32 %v1949, %v176
    %v2106 = vmul.f32 %v1949, %v177
    %v2107 = vmul.f32 %v1954, %v178
    %v2108 = vmul.f32 %v1954, %v179
    %v2109 = vmul.f32 %v1954, %v180
    %v2110 = vmul.f32 %v1954, %v181
    %v2111 = vmul.f32 %v1959, %v182
    %v2112 = vmul.f32 %v1959, %v183
    %v2113 = vmul.f32 %v1959, %v184
    %v2114 = vmul.f32 %v1959, %v185
    %v2115 = vmul.f32 %v1964, %v186
    %v2116 = vmul.f32 %v1964, %v187
    %v2117 = vmul.f32 %v1964, %v188
    %v2118 = vmul.f32 %v1964, %v189
    %v2119 = vmul.f32 %v1969, %v190
    %v2120 = vmul.f32 %v1969, %v191
    %v2121 = vmul.f32 %v1969, %v192
    %v2122 = vmul.f32 %v1969, %v193
    %v2123 = vadd.f32 %v1971, %v1975
    %v2124 = vadd.f32 %v2123, %v1979
    %v2125 = vadd.f32 %v2124, %v1983
    %v2126 = vadd.f32 %v2125, %v1987
    %v2127 = vadd.f32 %v2126, %v1991
    %v2128 = vadd.f32 %v2127, %v1995
    %v2129 = vadd.f32 %v2128, %v1999
    %v2130 = vadd.f32 %v2129, %v2003
    %v2131 = vadd.f32 %v2130, %v2007
    %v2132 = vadd.f32 %v2131, %v2011
    %v2133 = vadd.f32 %v2132, %v2015
    %v2134 = vadd.f32 %v2133, %v2019
    %v2135 = vadd.f32 %v2134, %v2023
    %v2136 = vadd.f32 %v2135, %v2027
    %v2137 = vadd.f32 %v2136, %v2031
    %v2138 = vadd.f32 %v2137, %v2035
    %v2139 = vadd.f32 %v2138, %v2039
    %v2140 = vadd.f32 %v2139, %v2043
    %v2141 = vadd.f32 %v2140, %v2047
    %v2142 = vadd.f32 %v2141, %v2051
    %v2143 = vadd.f32 %v2142, %v2055
    %v2144 = vadd.f32 %v2143, %v2059
    %v2145 = vadd.f32 %v2144, %v2063
    %v2146 = vadd.f32 %v2145, %v2067
    %v2147 = vadd.f32 %v2146, %v2071
    %v2148 = vadd.f32 %v2147, %v2075
    %v2149 = vadd.f32 %v2148, %v2079
    %v2150 = vadd.f32 %v2149, %v2083
    %v2151 = vadd.f32 %v2150, %v2087
    %v2152 = vadd.f32 %v2151, %v2091
    %v2153 = vadd.f32 %v2152, %v2095
    %v2154 = vadd.f32 %v2153, %v2099
    %v2155 = vadd.f32 %v2154, %v2103
    %v2156 = vadd.f32 %v2155, %v2107
    %v2157 = vadd.f32 %v2156, %v2111
    %v2158 = vadd.f32 %v2157, %v2115
    %v2159 = vsel %vm1098, %v2119, 0.0
    %v2160 = vadd.f32 %v2158, %v2159
    %v2161 = vrot.slane %v2160, 4
    %v2162 = vadd.f32 %v2160, %v2161
    %v2163 = vrot.slane %v2162, 2
    %v2164 = vadd.f32 %v2162, %v2163
    %v2165 = vrot.slane %v2164, 1
    %v2166 = vadd.f32 %v2164, %v2165
    %v2167 = vadd.f32 %v1972, %v1976
    %v2168 = vadd.f32 %v2167, %v1980
    %v2169 = vadd.f32 %v2168, %v1984
    %v2170 = vadd.f32 %v2169, %v1988
    %v2171 = vadd.f32 %v2170, %v1992
    %v2172 = vadd.f32 %v2171, %v1996
    %v2173 = vadd.f32 %v2172, %v2000
    %v2174 = vadd.f32 %v2173, %v2004
    %v2175 = vadd.f32 %v2174, %v2008
    %v2176 = vadd.f32 %v2175, %v2012
    %v2177 = vadd.f32 %v2176, %v2016
    %v2178 = vadd.f32 %v2177, %v2020
    %v2179 = vadd.f32 %v2178, %v2024
    %v2180 = vadd.f32 %v2179, %v2028
    %v2181 = vadd.f32 %v2180, %v2032
    %v2182 = vadd.f32 %v2181, %v2036
    %v2183 = vadd.f32 %v2182, %v2040
    %v2184 = vadd.f32 %v2183, %v2044
    %v2185 = vadd.f32 %v2184, %v2048
    %v2186 = vadd.f32 %v2185, %v2052
    %v2187 = vadd.f32 %v2186, %v2056
    %v2188 = vadd.f32 %v2187, %v2060
    %v2189 = vadd.f32 %v2188, %v2064
    %v2190 = vadd.f32 %v2189, %v2068
    %v2191 = vadd.f32 %v2190, %v2072
    %v2192 = vadd.f32 %v2191, %v2076
    %v2193 = vadd.f32 %v2192, %v2080
    %v2194 = vadd.f32 %v2193, %v2084
    %v2195 = vadd.f32 %v2194, %v2088
    %v2196 = vadd.f32 %v2195, %v2092
    %v2197 = vadd.f32 %v2196, %v2096
    %v2198 = vadd.f32 %v2197, %v2100
    %v2199 = vadd.f32 %v2198, %v2104
    %v2200 = vadd.f32 %v2199, %v2108
    %v2201 = vadd.f32 %v2200, %v2112
    %v2202 = vadd.f32 %v2201, %v2116
    %v2203 = vsel %vm1098, %v2120, 0.0
    %v2204 = vadd.f32 %v2202, %v2203
    %v2205 = vrot.slane %v2204, 4
    %v2206 = vadd.f32 %v2204, %v2205
    %v2207 = vrot.slane %v2206, 2
    %v2208 = vadd.f32 %v2206, %v2207
    %v2209 = vrot.slane %v2208, 1
    %v2210 = vadd.f32 %v2208, %v2209
    %v2211 = vadd.f32 %v1973, %v1977
    %v2212 = vadd.f32 %v2211, %v1981
    %v2213 = vadd.f32 %v2212, %v1985
    %v2214 = vadd.f32 %v2213, %v1989
    %v2215 = vadd.f32 %v2214, %v1993
    %v2216 = vadd.f32 %v2215, %v1997
    %v2217 = vadd.f32 %v2216, %v2001
    %v2218 = vadd.f32 %v2217, %v2005
    %v2219 = vadd.f32 %v2218, %v2009
    %v2220 = vadd.f32 %v2219, %v2013
    %v2221 = vadd.f32 %v2220, %v2017
    %v2222 = vadd.f32 %v2221, %v2021
    %v2223 = vadd.f32 %v2222, %v2025
    %v2224 = vadd.f32 %v2223, %v2029
    %v2225 = vadd.f32 %v2224, %v2033
    %v2226 = vadd.f32 %v2225, %v2037
    %v2227 = vadd.f32 %v2226, %v2041
    %v2228 = vadd.f32 %v2227, %v2045
    %v2229 = vadd.f32 %v2228, %v2049
    %v2230 = vadd.f32 %v2229, %v2053
    %v2231 = vadd.f32 %v2230, %v2057
    %v2232 = vadd.f32 %v2231, %v2061
    %v2233 = vadd.f32 %v2232, %v2065
    %v2234 = vadd.f32 %v2233, %v2069
    %v2235 = vadd.f32 %v2234, %v2073
    %v2236 = vadd.f32 %v2235, %v2077
    %v2237 = vadd.f32 %v2236, %v2081
    %v2238 = vadd.f32 %v2237, %v2085
    %v2239 = vadd.f32 %v2238, %v2089
    %v2240 = vadd.f32 %v2239, %v2093
    %v2241 = vadd.f32 %v2240, %v2097
    %v2242 = vadd.f32 %v2241, %v2101
    %v2243 = vadd.f32 %v2242, %v2105
    %v2244 = vadd.f32 %v2243, %v2109
    %v2245 = vadd.f32 %v2244, %v2113
    %v2246 = vadd.f32 %v2245, %v2117
    %v2247 = vsel %vm1098, %v2121, 0.0
    %v2248 = vadd.f32 %v2246, %v2247
    %v2249 = vrot.slane %v2248, 4
    %v2250 = vadd.f32 %v2248, %v2249
    %v2251 = vrot.slane %v2250, 2
    %v2252 = vadd.f32 %v2250, %v2251
    %v2253 = vrot.slane %v2252, 1
    %v2254 = vadd.f32 %v2252, %v2253
    %v2255 = vadd.f32 %v1974, %v1978
    %v2256 = vadd.f32 %v2255, %v1982
    %v2257 = vadd.f32 %v2256, %v1986
    %v2258 = vadd.f32 %v2257, %v1990
    %v2259 = vadd.f32 %v2258, %v1994
    %v2260 = vadd.f32 %v2259, %v1998
    %v2261 = vadd.f32 %v2260, %v2002
    %v2262 = vadd.f32 %v2261, %v2006
    %v2263 = vadd.f32 %v2262, %v2010
    %v2264 = vadd.f32 %v2263, %v2014
    %v2265 = vadd.f32 %v2264, %v2018
    %v2266 = vadd.f32 %v2265, %v2022
    %v2267 = vadd.f32 %v2266, %v2026
    %v2268 = vadd.f32 %v2267, %v2030
    %v2269 = vadd.f32 %v2268, %v2034
    %v2270 = vadd.f32 %v2269, %v2038
    %v2271 = vadd.f32 %v2270, %v2042
    %v2272 = vadd.f32 %v2271, %v2046
    %v2273 = vadd.f32 %v2272, %v2050
    %v2274 = vadd.f32 %v2273, %v2054
    %v2275 = vadd.f32 %v2274, %v2058
    %v2276 = vadd.f32 %v2275, %v2062
    %v2277 = vadd.f32 %v2276, %v2066
    %v2278 = vadd.f32 %v2277, %v2070
    %v2279 = vadd.f32 %v2278, %v2074
    %v2280 = vadd.f32 %v2279, %v2078
    %v2281 = vadd.f32 %v2280, %v2082
    %v2282 = vadd.f32 %v2281, %v2086
    %v2283 = vadd.f32 %v2282, %v2090
    %v2284 = vadd.f32 %v2283, %v2094
    %v2285 = vadd.f32 %v2284, %v2098
    %v2286 = vadd.f32 %v2285, %v2102
    %v2287 = vadd.f32 %v2286, %v2106
    %v2288 = vadd.f32 %v2287, %v2110
    %v2289 = vadd.f32 %v2288, %v2114
    %v2290 = vadd.f32 %v2289, %v2118
    %v2291 = vsel %vm1098, %v2122, 0.0
    %v2292 = vadd.f32 %v2290, %v2291
    %v2293 = vrot.slane %v2292, 4
    %v2294 = vadd.f32 %v2292, %v2293
    %v2295 = vrot.slane %v2294, 2
    %v2296 = vadd.f32 %v2294, %v2295
    %v2297 = vrot.slane %v2296, 1
    %v2298 = vadd.f32 %v2296, %v2297
    %v2303 = vcombine.low %v2166, %v2210
    %v2304 = vcombine.low %v2254, %v2298
    %v2306 = vunpack.c.l.s4 1966171168
    %v2307 = vunpack.c.0.s8 %v2306
    %v2308 = vlaneseq
    %v2309 = vshrl.u32 %v2308, 7
    %v2310 = vsub.s32 %v2307, %v2309
    %v2311 = vrot.slane %v2303, %v2310
    %v2313 = vunpack.c.l.s4 1966171168
    %v2314 = vunpack.c.0.s8 %v2313
    %v2315 = vlaneseq
    %v2316 = vshrl.u32 %v2315, 7
    %v2317 = vsub.s32 %v2314, %v2316
    %v2318 = vrot.slane %v2304, %v2317
    %v2319 = vcombine.low %v2311, %v2318
    %v2321 = vunpack.c.l.s4 1966171168
    %v2322 = vunpack.c.0.s8 %v2321
    %v2323 = vlaneseq
    %v2324 = vshrl.u32 %v2323, 7
    %v2325 = vsub.s32 %v2322, %v2324
    %v2326 = vrot.slane %v2319, %v2325
    %v2328 = vlaneseq
    %vm2329 = vcmp.ge.s32.totalorder %v2328, 0
    %vm2330 = vcmp.lt.s32.totalorder %v2328, 512
    %vm2331 = vmand %vm2329, %vm2330
    %2332 = vst.msk [vmem:[#allocation6] sm:$0xf] %vm2331, %v2326
    // Predicated region
    $region26: #{datt_forward.1} parent=1 // pred_check
      _
    $region27: #{datt_forward.1} parent=1 // pred_check_branch
      %2334 = sbr.rel (0) target = $region29
    $region28: #{datt_forward.1} parent=1 // pred_region
      %s2336 = ssub.s32 64, 64
      %2337 = vsyncadd [#allocation5], %s2336
      %s2339 = sshll.u32 [#allocation6], 4
      %s2340 = int_to_ptr.vmem [resolvable:$true] %s2339
      %2342 = dma.vmem_to_hbm [thread:$0]  %s2340, 64, %s5, [#allocation5]
    $region29: #{datt_forward.1} parent=1 // pred_fallthru
      _
    // Predicated region
    $region30: #{datt_forward.1} parent=1 // pred_check
      _
    $region31: #{datt_forward.1} parent=1 // pred_check_branch
      %2344 = sbr.rel (0) target = $region33
    $region32: #{datt_forward.1} parent=1 // pred_region
      _
    $region33: #{datt_forward.1} parent=1 // pred_fallthru
      _
    // Predicated region
    $region34: #{datt_forward.1} parent=1 // pred_check
      _
    $region35: #{datt_forward.1} parent=1 // pred_check_branch
      %2346 = sbr.rel (0) target = $region37
    $region36: #{datt_forward.1} parent=1 // pred_region
      %s2348 = ssub.s32 4864, 4864
      %2349 = vsyncadd [#allocation8], %s2348
      %s2350 = sshll.u32 [#allocation7], 4
      %s2351 = int_to_ptr.vmem [resolvable:$true] %s2350
      %2356 = dma.vmem_to_hbm [thread:$0]  %s2351, 4864, %s7, [#allocation8], 128, 128, 8
    $region37: #{datt_forward.1} parent=1 // pred_fallthru
      _
    // Predicated region
    $region38: #{datt_forward.1} parent=1 // pred_check
      _
    $region39: #{datt_forward.1} parent=1 // pred_check_branch
      %2358 = sbr.rel (0) target = $region41
    $region40: #{datt_forward.1} parent=1 // pred_region
      %2359 = dma.done [#allocation5], 64
    $region41: #{datt_forward.1} parent=1 // pred_fallthru
      _
    // Predicated region
    $region42: #{datt_forward.1} parent=1 // pred_check
      _
    $region43: #{datt_forward.1} parent=1 // pred_check_branch
      %2361 = sbr.rel (0) target = $region45
    $region44: #{datt_forward.1} parent=1 // pred_region
      _
    $region45: #{datt_forward.1} parent=1 // pred_fallthru
      _
    // Predicated region
    $region46: #{datt_forward.1} parent=1 // pred_check
      _
    $region47: #{datt_forward.1} parent=1 // pred_check_branch
      %2363 = sbr.rel (0) target = $region49
    $region48: #{datt_forward.1} parent=1 // pred_region
      %2364 = dma.done [#allocation8], 4864
    $region49: #{datt_forward.1} parent=1 // pred_fallthru
      _
    %2365 = vsyncpa [#allocation4], 1
    %2366 = vsyncpa [#allocation5], 1
    %2367 = vsyncpa [#allocation8], 1

</llo_original>
